<compile_context>
chip_gen: v7x
topology: tpu7x:2x2x1
jax: 0.10.0
libtpu: 0.0.40
codegen_flags: <defaults>
</compile_context>

<pallas_src>
import jax
import jax.numpy as jnp
from jax import lax
from jax.experimental import pallas as pl
from jax.experimental.pallas import tpu as pltpu

# NormLayer constants (from the PyTorch module)
MEAN = (0.485, 0.456, 0.406)
STD = (0.229, 0.224, 0.225)

KH, KW, CIN = 3, 3, 3  # 3x3 conv over the 3 repeated channels


def _pick_row_tile(H, L_max, row_tile=None):
    """Largest multiple-of-8 divisor of H that leaves >=2 row tiles when H>=16 and
    keeps the ~12 live [Ht,L] f32 planes (9 windows + acc + slices) modest."""
    if row_tile is not None:
        assert H % row_tile == 0
        return row_tile
    if H % 8 != 0:
        # TODO(synk): support a ragged last row tile; fall back to whole-H for now.
        return H
    budget_elems = 64 * 1024           # per-plane element budget (~256 KiB f32)
    cap = H if H < 16 else H // 2       # prefer >=2 row tiles once H >= 16
    best, d = 8, 8
    while d <= cap:
        if H % d == 0 and d * L_max <= budget_elems:
            best = d
        d += 8
    return best


def _pick_batch_tile(B, W, n_ht, batch_tile=None, min_steps=4):
    """Largest lane-dense Bt (Bt*W % 128 == 0) whose grid still has >= min_steps
    steps (>= 2 per TensorCore on v7x); fall back to the densest small tile."""
    if batch_tile is not None:
        assert B % batch_tile == 0
        return batch_tile
    divs = [d for d in range(1, B + 1) if B % d == 0]
    dense = [d for d in divs if (d * W) % 128 == 0]
    cands = dense if dense else divs
    for d in sorted(cands, reverse=True):
        if (B // d) * n_ht >= min_steps:
            return d
    return min(cands)


def ga_net_features_norm(x, weight, bias, *, batch_tile=None, row_tile=None,
                         out_dtype=jnp.float32):
    """x: [B, H, W, 1] float32 (NHWC grayscale, values in 0..255)
    weight: [KH, KW, CIN, Cout] float32 (HWIO)
    bias:   [Cout] float32
    returns: [B, Cout, H, W] (NCHW, post-ReLU features)
    """
    B, H, W, C1 = x.shape
    assert C1 == 1 and H >= 2 and W >= 2
    Cout = bias.shape[0]
    assert weight.shape == (KH, KW, CIN, Cout)

    mean = jnp.asarray(MEAN, jnp.float32)
    std = jnp.asarray(STD, jnp.float32)

    # ---- fold NormLayer + identical-channel (grayscale) sum into the conv -------
    w32 = weight.astype(jnp.float32)
    w_eff = (w32 / (std * 255.0)[None, None, :, None]).sum(axis=2)   # [3,3,Cout]
    b_tap = -(w32 * (mean / std)[None, None, :, None]).sum(axis=2)   # [3,3,Cout]

    bias32 = bias.astype(jnp.float32)
    c_all = bias32 + b_tap.sum(axis=(0, 1))   # interior bias (all 9 taps valid)
    top_s = b_tap[0].sum(axis=0)              # sums of b_tap over invalid-tap groups
    bot_s = b_tap[2].sum(axis=0)
    left_s = b_tap[:, 0].sum(axis=0)
    right_s = b_tap[:, 2].sum(axis=0)
    consts = jnp.concatenate([c_all, top_s, bot_s, left_s, right_s,
                              b_tap[0, 0], b_tap[0, 2], b_tap[2, 0], b_tap[2, 2]])
    w_flat = w_eff.reshape(-1)                # [(kh*3+kw)*Cout + co]

    # ---- tiling ------------------------------------------------------------------
    dense_divs = [d for d in range(1, B + 1) if B % d == 0 and (d * W) % 128 == 0]
    bt_max = max(dense_divs) if dense_divs else B
    Ht = _pick_row_tile(H, bt_max * W, row_tile)
    n_ht = H // Ht
    Bt = _pick_batch_tile(B, W, n_ht, batch_tile)
    G = B // Bt
    L = Bt * W
    Hp = H + 2

    # ---- precomputed lane-column masks (no in-kernel modulo) ----------------------
    col = jnp.arange(L, dtype=jnp.int32) % W
    is_left = (col == 0).astype(jnp.float32)
    is_right = (col == W - 1).astype(jnp.float32)
    colmask = jnp.zeros((8, L), jnp.float32)
    colmask = colmask.at[0].set(is_left).at[1].set(is_right)
    colmask = colmask.at[2].set(1.0 - is_left).at[3].set(1.0 - is_right)

    # ---- pack batch along lanes, zero-pad rows (halo for the 3x3 conv) ------------
    x_packed = (x[..., 0].astype(jnp.float32)
                .reshape(G, Bt, H, W).transpose(0, 2, 1, 3).reshape(G, H, L))
    x_padded = jnp.pad(x_packed, ((0, 0), (1, 1), (0, 0)))            # [G, Hp, L]

    n_taps = KH * KW

    def kernel(cm_ref, x_ref, w_ref, c_ref, o_ref):
        # cm_ref: [8, L]      f32 lane masks (is_left, is_right, left_ok, right_ok)
        # x_ref:  [1, Hp, L]  raw pixels, zero row pad top/bottom, resident per group
        # w_ref:  [9*Cout]    SMEM folded per-tap weights
        # c_ref:  [9*Cout]    SMEM bias constants + border corrections
        # o_ref:  [1, Cout, Ht, L]
        h = pl.program_id(1)

        is_l = cm_ref[0:1, :]
        is_r = cm_ref[1:2, :]
        ok_l = cm_ref[2:3, :]
        ok_r = cm_ref[3:4, :]

        # hoist all SMEM scalar reads before the MAC body
        wv = [w_ref[i] for i in range(n_taps * Cout)]
        cv = [c_ref[i] for i in range(9 * Cout)]

        base = pl.multiple_of(h * Ht, 8) if Ht % 8 == 0 else h * Ht

        # build the 9 masked tap windows once (shared across output channels)
        wins = []
        for kh in range(KH):
            rows = x_ref[0, pl.ds(base + kh, Ht), :]     # raw rows r + (kh-1), zeros off-image
            for kw in range(KW):
                sw = kw - 1
                if sw == 0:
                    shifted = rows
                else:
                    shifted = pltpu.roll(rows, shift=(-sw) % L, axis=1)
                if sw < 0:
                    win = shifted * ok_l                  # wrapped lanes are off-image -> zero
                elif sw > 0:
                    win = shifted * ok_r
                else:
                    win = shifted
                wins.append(win)

        lane_consts, top_rows, bot_rows = [], [], []
        for co in range(Cout):
            acc = wins[0] * wv[co]
            for t in range(1, n_taps):
                acc = acc + wins[t] * wv[t * Cout + co]
            # interior + left/right-edge bias (lane-only correction)
            lane_c = cv[co] - is_l * cv[3 * Cout + co] - is_r * cv[4 * Cout + co]
            o_ref[0, co] = jnp.maximum(acc + lane_c, 0.0).astype(o_ref.dtype)
            lane_consts.append(lane_c)
            top_rows.append(acc[0:1, :])
            bot_rows.append(acc[Ht - 1:Ht, :])

        # single-row fixups for the image's top/bottom rows (only boundary tiles pay)
        @pl.when(h == 0)
        def _():
            for co in range(Cout):
                lane_t = (-cv[Cout + co] + is_l * cv[5 * Cout + co]
                          + is_r * cv[6 * Cout + co])
                o_ref[0, co, 0:1, :] = jnp.maximum(
                    top_rows[co] + lane_consts[co] + lane_t, 0.0).astype(o_ref.dtype)

        @pl.when(h == n_ht - 1)
        def _():
            for co in range(Cout):
                lane_b = (-cv[2 * Cout + co] + is_l * cv[7 * Cout + co]
                          + is_r * cv[8 * Cout + co])
                o_ref[0, co, Ht - 1:Ht, :] = jnp.maximum(
                    bot_rows[co] + lane_consts[co] + lane_b, 0.0).astype(o_ref.dtype)

    out_bytes = Cout * Ht * L * jnp.dtype(out_dtype).itemsize
    in_bytes = Hp * L * 4
    vmem_limit = int(min(64 * 2 ** 20,
                         max(16 * 2 ** 20,
                             4 * (in_bytes + out_bytes) + (n_taps + 4) * Ht * L * 4)))

    out_packed = pl.pallas_call(
        kernel,
        out_shape=jax.ShapeDtypeStruct((G, Cout, H, L), out_dtype),
        grid=(G, n_ht),
        in_specs=[
            pl.BlockSpec((8, L), lambda g, h: (0, 0)),          # lane masks (resident)
            pl.BlockSpec((1, Hp, L), lambda g, h: (g, 0, 0)),   # padded pixel plane (resident per g)
            pl.BlockSpec(memory_space=pltpu.MemorySpace.SMEM),  # folded weights
            pl.BlockSpec(memory_space=pltpu.MemorySpace.SMEM),  # bias/border constants
        ],
        out_specs=pl.BlockSpec((1, Cout, Ht, L), lambda g, h: (g, 0, h, 0)),
        compiler_params=pltpu.CompilerParams(
            dimension_semantics=("parallel", "parallel"),
            vmem_limit_bytes=vmem_limit,
        ),
    )(colmask, x_padded, w_flat, consts)

    # ---- unpack lanes back to NCHW [B, Cout, H, W] --------------------------------
    out = (out_packed
           .reshape(G, Cout, H, Bt, W)
           .transpose(0, 3, 1, 2, 4)
           .reshape(B, Cout, H, W))
    return out


if __name__ == "__main__":
    key = jax.random.PRNGKey(0)
    kx, kw, kb = jax.random.split(key, 3)

    # Bt=8 -> packed lane width 128 (full vreg); Ht=8 -> 2 row tiles; grid=(2,2).
    B, H, W, Cout = 16, 16, 16, 8

    x = jax.random.uniform(kx, (B, H, W, 1), jnp.float32, 0.0, 255.0)
    weight = jax.random.normal(kw, (KH, KW, CIN, Cout), jnp.float32) * 0.1
    bias = jax.random.normal(kb, (Cout,), jnp.float32) * 0.1

    out = ga_net_features_norm(x, weight, bias)
    out = jax.block_until_ready(out)

    # Pure-JAX reference of the exact PyTorch forward semantics.
    mean = jnp.array(MEAN, jnp.float32)
    std = jnp.array(STD, jnp.float32)
    xn = (jnp.repeat(x, 3, axis=-1) / 255.0 - mean) / std          # [B,H,W,3]
    xn = jnp.transpose(xn, (0, 3, 1, 2))                            # NCHW
    w_oihw = jnp.transpose(weight, (3, 2, 0, 1))                    # OIHW
    ref = lax.conv_general_dilated(
        xn, w_oihw, window_strides=(1, 1), padding="SAME",
        dimension_numbers=("NCHW", "OIHW", "NCHW"),
        precision=lax.Precision.HIGHEST,
    )
    ref = jnp.maximum(ref + bias[None, :, None, None], 0.0)

    assert out.shape == ref.shape
    err = float(jnp.max(jnp.abs(out - ref)))
    assert jnp.allclose(out, ref, atol=1e-4, rtol=1e-4), f"max abs err {err}"

    print("KERNEL_OK")
</pallas_src>

<mosaic_0001>
module attributes {stable_mosaic.version = 11 : i64} {
  func.func @kernel(%arg0: i32, %arg1: i32, %arg2: memref<8x128xf32, #tpu.memory_space<vmem>>, %arg3: memref<1x18x128xf32, #tpu.memory_space<vmem>>, %arg4: memref<72xf32, #tpu.memory_space<smem>>, %arg5: memref<72xf32, #tpu.memory_space<smem>>, %arg6: memref<1x8x8x128xf32, #tpu.memory_space<vmem>>) attributes {dimension_semantics = [#tpu.dimension_semantics<parallel>, #tpu.dimension_semantics<parallel>], iteration_bounds = array<i64: 2, 2>, scalar_prefetch = 0 : i64, scratch_operands = 0 : i64, tpu.core_type = #tpu.core_type<tc>, window_params = [{pipeline_mode = #tpu.pipeline_mode<synchronous>, transform_indices = @transform_0, window_bounds = array<i64: 8, 128>}, {transform_indices = @transform_1, window_bounds = array<i64: 1, 18, 128>}, {transform_indices = @transform_2, window_bounds = array<i64: 72>}, {transform_indices = @transform_3, window_bounds = array<i64: 72>}, {transform_indices = @transform_4, window_bounds = array<i64: 1, 8, 8, 128>}]} {
    %c0 = arith.constant 0 : index
    %c0_0 = arith.constant 0 : index
    %0 = vector.load %arg2[%c0, %c0_0] : memref<8x128xf32, #tpu.memory_space<vmem>>, vector<1x128xf32>
    %c1 = arith.constant 1 : index
    %c0_1 = arith.constant 0 : index
    %1 = vector.load %arg2[%c1, %c0_1] : memref<8x128xf32, #tpu.memory_space<vmem>>, vector<1x128xf32>
    %c2 = arith.constant 2 : index
    %c0_2 = arith.constant 0 : index
    %2 = vector.load %arg2[%c2, %c0_2] : memref<8x128xf32, #tpu.memory_space<vmem>>, vector<1x128xf32>
    %c3 = arith.constant 3 : index
    %c0_3 = arith.constant 0 : index
    %3 = vector.load %arg2[%c3, %c0_3] : memref<8x128xf32, #tpu.memory_space<vmem>>, vector<1x128xf32>
    %c0_4 = arith.constant 0 : index
    %4 = memref.load %arg4[%c0_4] : memref<72xf32, #tpu.memory_space<smem>>
    %c1_5 = arith.constant 1 : index
    %5 = memref.load %arg4[%c1_5] : memref<72xf32, #tpu.memory_space<smem>>
    %c2_6 = arith.constant 2 : index
    %6 = memref.load %arg4[%c2_6] : memref<72xf32, #tpu.memory_space<smem>>
    %c3_7 = arith.constant 3 : index
    %7 = memref.load %arg4[%c3_7] : memref<72xf32, #tpu.memory_space<smem>>
    %c4 = arith.constant 4 : index
    %8 = memref.load %arg4[%c4] : memref<72xf32, #tpu.memory_space<smem>>
    %c5 = arith.constant 5 : index
    %9 = memref.load %arg4[%c5] : memref<72xf32, #tpu.memory_space<smem>>
    %c6 = arith.constant 6 : index
    %10 = memref.load %arg4[%c6] : memref<72xf32, #tpu.memory_space<smem>>
    %c7 = arith.constant 7 : index
    %11 = memref.load %arg4[%c7] : memref<72xf32, #tpu.memory_space<smem>>
    %c8 = arith.constant 8 : index
    %12 = memref.load %arg4[%c8] : memref<72xf32, #tpu.memory_space<smem>>
    %c9 = arith.constant 9 : index
    %13 = memref.load %arg4[%c9] : memref<72xf32, #tpu.memory_space<smem>>
    %c10 = arith.constant 10 : index
    %14 = memref.load %arg4[%c10] : memref<72xf32, #tpu.memory_space<smem>>
    %c11 = arith.constant 11 : index
    %15 = memref.load %arg4[%c11] : memref<72xf32, #tpu.memory_space<smem>>
    %c12 = arith.constant 12 : index
    %16 = memref.load %arg4[%c12] : memref<72xf32, #tpu.memory_space<smem>>
    %c13 = arith.constant 13 : index
    %17 = memref.load %arg4[%c13] : memref<72xf32, #tpu.memory_space<smem>>
    %c14 = arith.constant 14 : index
    %18 = memref.load %arg4[%c14] : memref<72xf32, #tpu.memory_space<smem>>
    %c15 = arith.constant 15 : index
    %19 = memref.load %arg4[%c15] : memref<72xf32, #tpu.memory_space<smem>>
    %c16 = arith.constant 16 : index
    %20 = memref.load %arg4[%c16] : memref<72xf32, #tpu.memory_space<smem>>
    %c17 = arith.constant 17 : index
    %21 = memref.load %arg4[%c17] : memref<72xf32, #tpu.memory_space<smem>>
    %c18 = arith.constant 18 : index
    %22 = memref.load %arg4[%c18] : memref<72xf32, #tpu.memory_space<smem>>
    %c19 = arith.constant 19 : index
    %23 = memref.load %arg4[%c19] : memref<72xf32, #tpu.memory_space<smem>>
    %c20 = arith.constant 20 : index
    %24 = memref.load %arg4[%c20] : memref<72xf32, #tpu.memory_space<smem>>
    %c21 = arith.constant 21 : index
    %25 = memref.load %arg4[%c21] : memref<72xf32, #tpu.memory_space<smem>>
    %c22 = arith.constant 22 : index
    %26 = memref.load %arg4[%c22] : memref<72xf32, #tpu.memory_space<smem>>
    %c23 = arith.constant 23 : index
    %27 = memref.load %arg4[%c23] : memref<72xf32, #tpu.memory_space<smem>>
    %c24 = arith.constant 24 : index
    %28 = memref.load %arg4[%c24] : memref<72xf32, #tpu.memory_space<smem>>
    %c25 = arith.constant 25 : index
    %29 = memref.load %arg4[%c25] : memref<72xf32, #tpu.memory_space<smem>>
    %c26 = arith.constant 26 : index
    %30 = memref.load %arg4[%c26] : memref<72xf32, #tpu.memory_space<smem>>
    %c27 = arith.constant 27 : index
    %31 = memref.load %arg4[%c27] : memref<72xf32, #tpu.memory_space<smem>>
    %c28 = arith.constant 28 : index
    %32 = memref.load %arg4[%c28] : memref<72xf32, #tpu.memory_space<smem>>
    %c29 = arith.constant 29 : index
    %33 = memref.load %arg4[%c29] : memref<72xf32, #tpu.memory_space<smem>>
    %c30 = arith.constant 30 : index
    %34 = memref.load %arg4[%c30] : memref<72xf32, #tpu.memory_space<smem>>
    %c31 = arith.constant 31 : index
    %35 = memref.load %arg4[%c31] : memref<72xf32, #tpu.memory_space<smem>>
    %c32 = arith.constant 32 : index
    %36 = memref.load %arg4[%c32] : memref<72xf32, #tpu.memory_space<smem>>
    %c33 = arith.constant 33 : index
    %37 = memref.load %arg4[%c33] : memref<72xf32, #tpu.memory_space<smem>>
    %c34 = arith.constant 34 : index
    %38 = memref.load %arg4[%c34] : memref<72xf32, #tpu.memory_space<smem>>
    %c35 = arith.constant 35 : index
    %39 = memref.load %arg4[%c35] : memref<72xf32, #tpu.memory_space<smem>>
    %c36 = arith.constant 36 : index
    %40 = memref.load %arg4[%c36] : memref<72xf32, #tpu.memory_space<smem>>
    %c37 = arith.constant 37 : index
    %41 = memref.load %arg4[%c37] : memref<72xf32, #tpu.memory_space<smem>>
    %c38 = arith.constant 38 : index
    %42 = memref.load %arg4[%c38] : memref<72xf32, #tpu.memory_space<smem>>
    %c39 = arith.constant 39 : index
    %43 = memref.load %arg4[%c39] : memref<72xf32, #tpu.memory_space<smem>>
    %c40 = arith.constant 40 : index
    %44 = memref.load %arg4[%c40] : memref<72xf32, #tpu.memory_space<smem>>
    %c41 = arith.constant 41 : index
    %45 = memref.load %arg4[%c41] : memref<72xf32, #tpu.memory_space<smem>>
    %c42 = arith.constant 42 : index
    %46 = memref.load %arg4[%c42] : memref<72xf32, #tpu.memory_space<smem>>
    %c43 = arith.constant 43 : index
    %47 = memref.load %arg4[%c43] : memref<72xf32, #tpu.memory_space<smem>>
    %c44 = arith.constant 44 : index
    %48 = memref.load %arg4[%c44] : memref<72xf32, #tpu.memory_space<smem>>
    %c45 = arith.constant 45 : index
    %49 = memref.load %arg4[%c45] : memref<72xf32, #tpu.memory_space<smem>>
    %c46 = arith.constant 46 : index
    %50 = memref.load %arg4[%c46] : memref<72xf32, #tpu.memory_space<smem>>
    %c47 = arith.constant 47 : index
    %51 = memref.load %arg4[%c47] : memref<72xf32, #tpu.memory_space<smem>>
    %c48 = arith.constant 48 : index
    %52 = memref.load %arg4[%c48] : memref<72xf32, #tpu.memory_space<smem>>
    %c49 = arith.constant 49 : index
    %53 = memref.load %arg4[%c49] : memref<72xf32, #tpu.memory_space<smem>>
    %c50 = arith.constant 50 : index
    %54 = memref.load %arg4[%c50] : memref<72xf32, #tpu.memory_space<smem>>
    %c51 = arith.constant 51 : index
    %55 = memref.load %arg4[%c51] : memref<72xf32, #tpu.memory_space<smem>>
    %c52 = arith.constant 52 : index
    %56 = memref.load %arg4[%c52] : memref<72xf32, #tpu.memory_space<smem>>
    %c53 = arith.constant 53 : index
    %57 = memref.load %arg4[%c53] : memref<72xf32, #tpu.memory_space<smem>>
    %c54 = arith.constant 54 : index
    %58 = memref.load %arg4[%c54] : memref<72xf32, #tpu.memory_space<smem>>
    %c55 = arith.constant 55 : index
    %59 = memref.load %arg4[%c55] : memref<72xf32, #tpu.memory_space<smem>>
    %c56 = arith.constant 56 : index
    %60 = memref.load %arg4[%c56] : memref<72xf32, #tpu.memory_space<smem>>
    %c57 = arith.constant 57 : index
    %61 = memref.load %arg4[%c57] : memref<72xf32, #tpu.memory_space<smem>>
    %c58 = arith.constant 58 : index
    %62 = memref.load %arg4[%c58] : memref<72xf32, #tpu.memory_space<smem>>
    %c59 = arith.constant 59 : index
    %63 = memref.load %arg4[%c59] : memref<72xf32, #tpu.memory_space<smem>>
    %c60 = arith.constant 60 : index
    %64 = memref.load %arg4[%c60] : memref<72xf32, #tpu.memory_space<smem>>
    %c61 = arith.constant 61 : index
    %65 = memref.load %arg4[%c61] : memref<72xf32, #tpu.memory_space<smem>>
    %c62 = arith.constant 62 : index
    %66 = memref.load %arg4[%c62] : memref<72xf32, #tpu.memory_space<smem>>
    %c63 = arith.constant 63 : index
    %67 = memref.load %arg4[%c63] : memref<72xf32, #tpu.memory_space<smem>>
    %c64 = arith.constant 64 : index
    %68 = memref.load %arg4[%c64] : memref<72xf32, #tpu.memory_space<smem>>
    %c65 = arith.constant 65 : index
    %69 = memref.load %arg4[%c65] : memref<72xf32, #tpu.memory_space<smem>>
    %c66 = arith.constant 66 : index
    %70 = memref.load %arg4[%c66] : memref<72xf32, #tpu.memory_space<smem>>
    %c67 = arith.constant 67 : index
    %71 = memref.load %arg4[%c67] : memref<72xf32, #tpu.memory_space<smem>>
    %c68 = arith.constant 68 : index
    %72 = memref.load %arg4[%c68] : memref<72xf32, #tpu.memory_space<smem>>
    %c69 = arith.constant 69 : index
    %73 = memref.load %arg4[%c69] : memref<72xf32, #tpu.memory_space<smem>>
    %c70 = arith.constant 70 : index
    %74 = memref.load %arg4[%c70] : memref<72xf32, #tpu.memory_space<smem>>
    %c71 = arith.constant 71 : index
    %75 = memref.load %arg4[%c71] : memref<72xf32, #tpu.memory_space<smem>>
    %c0_8 = arith.constant 0 : index
    %76 = memref.load %arg5[%c0_8] : memref<72xf32, #tpu.memory_space<smem>>
    %c1_9 = arith.constant 1 : index
    %77 = memref.load %arg5[%c1_9] : memref<72xf32, #tpu.memory_space<smem>>
    %c2_10 = arith.constant 2 : index
    %78 = memref.load %arg5[%c2_10] : memref<72xf32, #tpu.memory_space<smem>>
    %c3_11 = arith.constant 3 : index
    %79 = memref.load %arg5[%c3_11] : memref<72xf32, #tpu.memory_space<smem>>
    %c4_12 = arith.constant 4 : index
    %80 = memref.load %arg5[%c4_12] : memref<72xf32, #tpu.memory_space<smem>>
    %c5_13 = arith.constant 5 : index
    %81 = memref.load %arg5[%c5_13] : memref<72xf32, #tpu.memory_space<smem>>
    %c6_14 = arith.constant 6 : index
    %82 = memref.load %arg5[%c6_14] : memref<72xf32, #tpu.memory_space<smem>>
    %c7_15 = arith.constant 7 : index
    %83 = memref.load %arg5[%c7_15] : memref<72xf32, #tpu.memory_space<smem>>
    %c8_16 = arith.constant 8 : index
    %84 = memref.load %arg5[%c8_16] : memref<72xf32, #tpu.memory_space<smem>>
    %c9_17 = arith.constant 9 : index
    %85 = memref.load %arg5[%c9_17] : memref<72xf32, #tpu.memory_space<smem>>
    %c10_18 = arith.constant 10 : index
    %86 = memref.load %arg5[%c10_18] : memref<72xf32, #tpu.memory_space<smem>>
    %c11_19 = arith.constant 11 : index
    %87 = memref.load %arg5[%c11_19] : memref<72xf32, #tpu.memory_space<smem>>
    %c12_20 = arith.constant 12 : index
    %88 = memref.load %arg5[%c12_20] : memref<72xf32, #tpu.memory_space<smem>>
    %c13_21 = arith.constant 13 : index
    %89 = memref.load %arg5[%c13_21] : memref<72xf32, #tpu.memory_space<smem>>
    %c14_22 = arith.constant 14 : index
    %90 = memref.load %arg5[%c14_22] : memref<72xf32, #tpu.memory_space<smem>>
    %c15_23 = arith.constant 15 : index
    %91 = memref.load %arg5[%c15_23] : memref<72xf32, #tpu.memory_space<smem>>
    %c16_24 = arith.constant 16 : index
    %92 = memref.load %arg5[%c16_24] : memref<72xf32, #tpu.memory_space<smem>>
    %c17_25 = arith.constant 17 : index
    %93 = memref.load %arg5[%c17_25] : memref<72xf32, #tpu.memory_space<smem>>
    %c18_26 = arith.constant 18 : index
    %94 = memref.load %arg5[%c18_26] : memref<72xf32, #tpu.memory_space<smem>>
    %c19_27 = arith.constant 19 : index
    %95 = memref.load %arg5[%c19_27] : memref<72xf32, #tpu.memory_space<smem>>
    %c20_28 = arith.constant 20 : index
    %96 = memref.load %arg5[%c20_28] : memref<72xf32, #tpu.memory_space<smem>>
    %c21_29 = arith.constant 21 : index
    %97 = memref.load %arg5[%c21_29] : memref<72xf32, #tpu.memory_space<smem>>
    %c22_30 = arith.constant 22 : index
    %98 = memref.load %arg5[%c22_30] : memref<72xf32, #tpu.memory_space<smem>>
    %c23_31 = arith.constant 23 : index
    %99 = memref.load %arg5[%c23_31] : memref<72xf32, #tpu.memory_space<smem>>
    %c24_32 = arith.constant 24 : index
    %100 = memref.load %arg5[%c24_32] : memref<72xf32, #tpu.memory_space<smem>>
    %c25_33 = arith.constant 25 : index
    %101 = memref.load %arg5[%c25_33] : memref<72xf32, #tpu.memory_space<smem>>
    %c26_34 = arith.constant 26 : index
    %102 = memref.load %arg5[%c26_34] : memref<72xf32, #tpu.memory_space<smem>>
    %c27_35 = arith.constant 27 : index
    %103 = memref.load %arg5[%c27_35] : memref<72xf32, #tpu.memory_space<smem>>
    %c28_36 = arith.constant 28 : index
    %104 = memref.load %arg5[%c28_36] : memref<72xf32, #tpu.memory_space<smem>>
    %c29_37 = arith.constant 29 : index
    %105 = memref.load %arg5[%c29_37] : memref<72xf32, #tpu.memory_space<smem>>
    %c30_38 = arith.constant 30 : index
    %106 = memref.load %arg5[%c30_38] : memref<72xf32, #tpu.memory_space<smem>>
    %c31_39 = arith.constant 31 : index
    %107 = memref.load %arg5[%c31_39] : memref<72xf32, #tpu.memory_space<smem>>
    %c32_40 = arith.constant 32 : index
    %108 = memref.load %arg5[%c32_40] : memref<72xf32, #tpu.memory_space<smem>>
    %c33_41 = arith.constant 33 : index
    %109 = memref.load %arg5[%c33_41] : memref<72xf32, #tpu.memory_space<smem>>
    %c34_42 = arith.constant 34 : index
    %110 = memref.load %arg5[%c34_42] : memref<72xf32, #tpu.memory_space<smem>>
    %c35_43 = arith.constant 35 : index
    %111 = memref.load %arg5[%c35_43] : memref<72xf32, #tpu.memory_space<smem>>
    %c36_44 = arith.constant 36 : index
    %112 = memref.load %arg5[%c36_44] : memref<72xf32, #tpu.memory_space<smem>>
    %c37_45 = arith.constant 37 : index
    %113 = memref.load %arg5[%c37_45] : memref<72xf32, #tpu.memory_space<smem>>
    %c38_46 = arith.constant 38 : index
    %114 = memref.load %arg5[%c38_46] : memref<72xf32, #tpu.memory_space<smem>>
    %c39_47 = arith.constant 39 : index
    %115 = memref.load %arg5[%c39_47] : memref<72xf32, #tpu.memory_space<smem>>
    %c40_48 = arith.constant 40 : index
    %116 = memref.load %arg5[%c40_48] : memref<72xf32, #tpu.memory_space<smem>>
    %c41_49 = arith.constant 41 : index
    %117 = memref.load %arg5[%c41_49] : memref<72xf32, #tpu.memory_space<smem>>
    %c42_50 = arith.constant 42 : index
    %118 = memref.load %arg5[%c42_50] : memref<72xf32, #tpu.memory_space<smem>>
    %c43_51 = arith.constant 43 : index
    %119 = memref.load %arg5[%c43_51] : memref<72xf32, #tpu.memory_space<smem>>
    %c44_52 = arith.constant 44 : index
    %120 = memref.load %arg5[%c44_52] : memref<72xf32, #tpu.memory_space<smem>>
    %c45_53 = arith.constant 45 : index
    %121 = memref.load %arg5[%c45_53] : memref<72xf32, #tpu.memory_space<smem>>
    %c46_54 = arith.constant 46 : index
    %122 = memref.load %arg5[%c46_54] : memref<72xf32, #tpu.memory_space<smem>>
    %c47_55 = arith.constant 47 : index
    %123 = memref.load %arg5[%c47_55] : memref<72xf32, #tpu.memory_space<smem>>
    %c48_56 = arith.constant 48 : index
    %124 = memref.load %arg5[%c48_56] : memref<72xf32, #tpu.memory_space<smem>>
    %c49_57 = arith.constant 49 : index
    %125 = memref.load %arg5[%c49_57] : memref<72xf32, #tpu.memory_space<smem>>
    %c50_58 = arith.constant 50 : index
    %126 = memref.load %arg5[%c50_58] : memref<72xf32, #tpu.memory_space<smem>>
    %c51_59 = arith.constant 51 : index
    %127 = memref.load %arg5[%c51_59] : memref<72xf32, #tpu.memory_space<smem>>
    %c52_60 = arith.constant 52 : index
    %128 = memref.load %arg5[%c52_60] : memref<72xf32, #tpu.memory_space<smem>>
    %c53_61 = arith.constant 53 : index
    %129 = memref.load %arg5[%c53_61] : memref<72xf32, #tpu.memory_space<smem>>
    %c54_62 = arith.constant 54 : index
    %130 = memref.load %arg5[%c54_62] : memref<72xf32, #tpu.memory_space<smem>>
    %c55_63 = arith.constant 55 : index
    %131 = memref.load %arg5[%c55_63] : memref<72xf32, #tpu.memory_space<smem>>
    %c56_64 = arith.constant 56 : index
    %132 = memref.load %arg5[%c56_64] : memref<72xf32, #tpu.memory_space<smem>>
    %c57_65 = arith.constant 57 : index
    %133 = memref.load %arg5[%c57_65] : memref<72xf32, #tpu.memory_space<smem>>
    %c58_66 = arith.constant 58 : index
    %134 = memref.load %arg5[%c58_66] : memref<72xf32, #tpu.memory_space<smem>>
    %c59_67 = arith.constant 59 : index
    %135 = memref.load %arg5[%c59_67] : memref<72xf32, #tpu.memory_space<smem>>
    %c60_68 = arith.constant 60 : index
    %136 = memref.load %arg5[%c60_68] : memref<72xf32, #tpu.memory_space<smem>>
    %c61_69 = arith.constant 61 : index
    %137 = memref.load %arg5[%c61_69] : memref<72xf32, #tpu.memory_space<smem>>
    %c62_70 = arith.constant 62 : index
    %138 = memref.load %arg5[%c62_70] : memref<72xf32, #tpu.memory_space<smem>>
    %c63_71 = arith.constant 63 : index
    %139 = memref.load %arg5[%c63_71] : memref<72xf32, #tpu.memory_space<smem>>
    %c64_72 = arith.constant 64 : index
    %140 = memref.load %arg5[%c64_72] : memref<72xf32, #tpu.memory_space<smem>>
    %c65_73 = arith.constant 65 : index
    %141 = memref.load %arg5[%c65_73] : memref<72xf32, #tpu.memory_space<smem>>
    %c66_74 = arith.constant 66 : index
    %142 = memref.load %arg5[%c66_74] : memref<72xf32, #tpu.memory_space<smem>>
    %c67_75 = arith.constant 67 : index
    %143 = memref.load %arg5[%c67_75] : memref<72xf32, #tpu.memory_space<smem>>
    %c68_76 = arith.constant 68 : index
    %144 = memref.load %arg5[%c68_76] : memref<72xf32, #tpu.memory_space<smem>>
    %c69_77 = arith.constant 69 : index
    %145 = memref.load %arg5[%c69_77] : memref<72xf32, #tpu.memory_space<smem>>
    %c70_78 = arith.constant 70 : index
    %146 = memref.load %arg5[%c70_78] : memref<72xf32, #tpu.memory_space<smem>>
    %c71_79 = arith.constant 71 : index
    %147 = memref.load %arg5[%c71_79] : memref<72xf32, #tpu.memory_space<smem>>
    %c8_i32 = arith.constant 8 : i32
    %148 = arith.muli %arg1, %c8_i32 : i32
    %149 = tpu.assume_multiple %148, 8 : i32
    %c0_i32 = arith.constant 0 : i32
    %150 = arith.addi %149, %c0_i32 : i32
    %c0_80 = arith.constant 0 : index
    %151 = arith.index_cast %150 : i32 to index
    %c0_81 = arith.constant 0 : index
    %152 = vector.load %arg3[%c0_80, %151, %c0_81] : memref<1x18x128xf32, #tpu.memory_space<vmem>>, vector<1x8x128xf32>
    %153 = vector.shape_cast %152 : vector<1x8x128xf32> to vector<8x128xf32>
    %c1_i32 = arith.constant 1 : i32
    %154 = tpu.dynamic_rotate %153 by %c1_i32 dim 1 : vector<8x128xf32>, i32 -> vector<8x128xf32>
    %155 = vector.broadcast %2 : vector<1x128xf32> to vector<8x128xf32>
    %156 = arith.mulf %154, %155 : vector<8x128xf32>
    %c127_i32 = arith.constant 127 : i32
    %157 = tpu.dynamic_rotate %153 by %c127_i32 dim 1 : vector<8x128xf32>, i32 -> vector<8x128xf32>
    %158 = vector.broadcast %3 : vector<1x128xf32> to vector<8x128xf32>
    %159 = arith.mulf %157, %158 : vector<8x128xf32>
    %c1_i32_82 = arith.constant 1 : i32
    %160 = arith.addi %149, %c1_i32_82 : i32
    %c0_83 = arith.constant 0 : index
    %161 = arith.index_cast %160 : i32 to index
    %c0_84 = arith.constant 0 : index
    %162 = vector.load %arg3[%c0_83, %161, %c0_84] : memref<1x18x128xf32, #tpu.memory_space<vmem>>, vector<1x8x128xf32>
    %163 = vector.shape_cast %162 : vector<1x8x128xf32> to vector<8x128xf32>
    %c1_i32_85 = arith.constant 1 : i32
    %164 = tpu.dynamic_rotate %163 by %c1_i32_85 dim 1 : vector<8x128xf32>, i32 -> vector<8x128xf32>
    %165 = vector.broadcast %2 : vector<1x128xf32> to vector<8x128xf32>
    %166 = arith.mulf %164, %165 : vector<8x128xf32>
    %c127_i32_86 = arith.constant 127 : i32
    %167 = tpu.dynamic_rotate %163 by %c127_i32_86 dim 1 : vector<8x128xf32>, i32 -> vector<8x128xf32>
    %168 = vector.broadcast %3 : vector<1x128xf32> to vector<8x128xf32>
    %169 = arith.mulf %167, %168 : vector<8x128xf32>
    %c2_i32 = arith.constant 2 : i32
    %170 = arith.addi %149, %c2_i32 : i32
    %c0_87 = arith.constant 0 : index
    %171 = arith.index_cast %170 : i32 to index
    %c0_88 = arith.constant 0 : index
    %172 = vector.load %arg3[%c0_87, %171, %c0_88] : memref<1x18x128xf32, #tpu.memory_space<vmem>>, vector<1x8x128xf32>
    %173 = vector.shape_cast %172 : vector<1x8x128xf32> to vector<8x128xf32>
    %c1_i32_89 = arith.constant 1 : i32
    %174 = tpu.dynamic_rotate %173 by %c1_i32_89 dim 1 : vector<8x128xf32>, i32 -> vector<8x128xf32>
    %175 = vector.broadcast %2 : vector<1x128xf32> to vector<8x128xf32>
    %176 = arith.mulf %174, %175 : vector<8x128xf32>
    %c127_i32_90 = arith.constant 127 : i32
    %177 = tpu.dynamic_rotate %173 by %c127_i32_90 dim 1 : vector<8x128xf32>, i32 -> vector<8x128xf32>
    %178 = vector.broadcast %3 : vector<1x128xf32> to vector<8x128xf32>
    %179 = arith.mulf %177, %178 : vector<8x128xf32>
    %180 = vector.broadcast %4 : f32 to vector<8x128xf32>
    %181 = arith.mulf %156, %180 : vector<8x128xf32>
    %182 = vector.broadcast %12 : f32 to vector<8x128xf32>
    %183 = arith.mulf %153, %182 : vector<8x128xf32>
    %184 = arith.addf %181, %183 : vector<8x128xf32>
    %185 = vector.broadcast %20 : f32 to vector<8x128xf32>
    %186 = arith.mulf %159, %185 : vector<8x128xf32>
    %187 = arith.addf %184, %186 : vector<8x128xf32>
    %188 = vector.broadcast %28 : f32 to vector<8x128xf32>
    %189 = arith.mulf %166, %188 : vector<8x128xf32>
    %190 = arith.addf %187, %189 : vector<8x128xf32>
    %191 = vector.broadcast %36 : f32 to vector<8x128xf32>
    %192 = arith.mulf %163, %191 : vector<8x128xf32>
    %193 = arith.addf %190, %192 : vector<8x128xf32>
    %194 = vector.broadcast %44 : f32 to vector<8x128xf32>
    %195 = arith.mulf %169, %194 : vector<8x128xf32>
    %196 = arith.addf %193, %195 : vector<8x128xf32>
    %197 = vector.broadcast %52 : f32 to vector<8x128xf32>
    %198 = arith.mulf %176, %197 : vector<8x128xf32>
    %199 = arith.addf %196, %198 : vector<8x128xf32>
    %200 = vector.broadcast %60 : f32 to vector<8x128xf32>
    %201 = arith.mulf %173, %200 : vector<8x128xf32>
    %202 = arith.addf %199, %201 : vector<8x128xf32>
    %203 = vector.broadcast %68 : f32 to vector<8x128xf32>
    %204 = arith.mulf %179, %203 : vector<8x128xf32>
    %205 = arith.addf %202, %204 : vector<8x128xf32>
    %206 = vector.broadcast %100 : f32 to vector<1x128xf32>
    %207 = arith.mulf %0, %206 : vector<1x128xf32>
    %208 = vector.broadcast %76 : f32 to vector<1x128xf32>
    %209 = arith.subf %208, %207 : vector<1x128xf32>
    %210 = vector.broadcast %108 : f32 to vector<1x128xf32>
    %211 = arith.mulf %1, %210 : vector<1x128xf32>
    %212 = arith.subf %209, %211 : vector<1x128xf32>
    %213 = vector.broadcast %212 : vector<1x128xf32> to vector<8x128xf32>
    %214 = arith.addf %205, %213 : vector<8x128xf32>
    %cst = arith.constant 0.000000e+00 : f32
    %215 = vector.broadcast %cst : f32 to vector<8x128xf32>
    %216 = arith.maximumf %214, %215 : vector<8x128xf32>
    %c0_91 = arith.constant 0 : index
    %c0_92 = arith.constant 0 : index
    %c0_93 = arith.constant 0 : index
    %c0_94 = arith.constant 0 : index
    %217 = vector.load %arg6[%c0_91, %c0_92, %c0_93, %c0_94] : memref<1x8x8x128xf32, #tpu.memory_space<vmem>>, vector<1x1x8x128xf32>
    %218 = vector.shape_cast %217 : vector<1x1x8x128xf32> to vector<8x128xf32>
    %219 = vector.shape_cast %216 : vector<8x128xf32> to vector<1x1x8x128xf32>
    tpu.vector_store %arg6[%c0_91, %c0_92, %c0_93, %c0_94], %219 {strides = array<i32>} : memref<1x8x8x128xf32, #tpu.memory_space<vmem>>, vector<1x1x8x128xf32>,
    %220 = vector.extract_strided_slice %205 {offsets = [0, 0], sizes = [1, 128], strides = [1, 1]} : vector<8x128xf32> to vector<1x128xf32>
    %221 = vector.extract_strided_slice %205 {offsets = [7, 0], sizes = [1, 128], strides = [1, 1]} : vector<8x128xf32> to vector<1x128xf32>
    %222 = vector.broadcast %5 : f32 to vector<8x128xf32>
    %223 = arith.mulf %156, %222 : vector<8x128xf32>
    %224 = vector.broadcast %13 : f32 to vector<8x128xf32>
    %225 = arith.mulf %153, %224 : vector<8x128xf32>
    %226 = arith.addf %223, %225 : vector<8x128xf32>
    %227 = vector.broadcast %21 : f32 to vector<8x128xf32>
    %228 = arith.mulf %159, %227 : vector<8x128xf32>
    %229 = arith.addf %226, %228 : vector<8x128xf32>
    %230 = vector.broadcast %29 : f32 to vector<8x128xf32>
    %231 = arith.mulf %166, %230 : vector<8x128xf32>
    %232 = arith.addf %229, %231 : vector<8x128xf32>
    %233 = vector.broadcast %37 : f32 to vector<8x128xf32>
    %234 = arith.mulf %163, %233 : vector<8x128xf32>
    %235 = arith.addf %232, %234 : vector<8x128xf32>
    %236 = vector.broadcast %45 : f32 to vector<8x128xf32>
    %237 = arith.mulf %169, %236 : vector<8x128xf32>
    %238 = arith.addf %235, %237 : vector<8x128xf32>
    %239 = vector.broadcast %53 : f32 to vector<8x128xf32>
    %240 = arith.mulf %176, %239 : vector<8x128xf32>
    %241 = arith.addf %238, %240 : vector<8x128xf32>
    %242 = vector.broadcast %61 : f32 to vector<8x128xf32>
    %243 = arith.mulf %173, %242 : vector<8x128xf32>
    %244 = arith.addf %241, %243 : vector<8x128xf32>
    %245 = vector.broadcast %69 : f32 to vector<8x128xf32>
    %246 = arith.mulf %179, %245 : vector<8x128xf32>
    %247 = arith.addf %244, %246 : vector<8x128xf32>
    %248 = vector.broadcast %101 : f32 to vector<1x128xf32>
    %249 = arith.mulf %0, %248 : vector<1x128xf32>
    %250 = vector.broadcast %77 : f32 to vector<1x128xf32>
    %251 = arith.subf %250, %249 : vector<1x128xf32>
    %252 = vector.broadcast %109 : f32 to vector<1x128xf32>
    %253 = arith.mulf %1, %252 : vector<1x128xf32>
    %254 = arith.subf %251, %253 : vector<1x128xf32>
    %255 = vector.broadcast %254 : vector<1x128xf32> to vector<8x128xf32>
    %256 = arith.addf %247, %255 : vector<8x128xf32>
    %cst_95 = arith.constant 0.000000e+00 : f32
    %257 = vector.broadcast %cst_95 : f32 to vector<8x128xf32>
    %258 = arith.maximumf %256, %257 : vector<8x128xf32>
    %c0_96 = arith.constant 0 : index
    %c1_97 = arith.constant 1 : index
    %c0_98 = arith.constant 0 : index
    %c0_99 = arith.constant 0 : index
    %259 = vector.load %arg6[%c0_96, %c1_97, %c0_98, %c0_99] : memref<1x8x8x128xf32, #tpu.memory_space<vmem>>, vector<1x1x8x128xf32>
    %260 = vector.shape_cast %259 : vector<1x1x8x128xf32> to vector<8x128xf32>
    %261 = vector.shape_cast %258 : vector<8x128xf32> to vector<1x1x8x128xf32>
    tpu.vector_store %arg6[%c0_96, %c1_97, %c0_98, %c0_99], %261 {strides = array<i32>} : memref<1x8x8x128xf32, #tpu.memory_space<vmem>>, vector<1x1x8x128xf32>,
    %262 = vector.extract_strided_slice %247 {offsets = [0, 0], sizes = [1, 128], strides = [1, 1]} : vector<8x128xf32> to vector<1x128xf32>
    %263 = vector.extract_strided_slice %247 {offsets = [7, 0], sizes = [1, 128], strides = [1, 1]} : vector<8x128xf32> to vector<1x128xf32>
    %264 = vector.broadcast %6 : f32 to vector<8x128xf32>
    %265 = arith.mulf %156, %264 : vector<8x128xf32>
    %266 = vector.broadcast %14 : f32 to vector<8x128xf32>
    %267 = arith.mulf %153, %266 : vector<8x128xf32>
    %268 = arith.addf %265, %267 : vector<8x128xf32>
    %269 = vector.broadcast %22 : f32 to vector<8x128xf32>
    %270 = arith.mulf %159, %269 : vector<8x128xf32>
    %271 = arith.addf %268, %270 : vector<8x128xf32>
    %272 = vector.broadcast %30 : f32 to vector<8x128xf32>
    %273 = arith.mulf %166, %272 : vector<8x128xf32>
    %274 = arith.addf %271, %273 : vector<8x128xf32>
    %275 = vector.broadcast %38 : f32 to vector<8x128xf32>
    %276 = arith.mulf %163, %275 : vector<8x128xf32>
    %277 = arith.addf %274, %276 : vector<8x128xf32>
    %278 = vector.broadcast %46 : f32 to vector<8x128xf32>
    %279 = arith.mulf %169, %278 : vector<8x128xf32>
    %280 = arith.addf %277, %279 : vector<8x128xf32>
    %281 = vector.broadcast %54 : f32 to vector<8x128xf32>
    %282 = arith.mulf %176, %281 : vector<8x128xf32>
    %283 = arith.addf %280, %282 : vector<8x128xf32>
    %284 = vector.broadcast %62 : f32 to vector<8x128xf32>
    %285 = arith.mulf %173, %284 : vector<8x128xf32>
    %286 = arith.addf %283, %285 : vector<8x128xf32>
    %287 = vector.broadcast %70 : f32 to vector<8x128xf32>
    %288 = arith.mulf %179, %287 : vector<8x128xf32>
    %289 = arith.addf %286, %288 : vector<8x128xf32>
    %290 = vector.broadcast %102 : f32 to vector<1x128xf32>
    %291 = arith.mulf %0, %290 : vector<1x128xf32>
    %292 = vector.broadcast %78 : f32 to vector<1x128xf32>
    %293 = arith.subf %292, %291 : vector<1x128xf32>
    %294 = vector.broadcast %110 : f32 to vector<1x128xf32>
    %295 = arith.mulf %1, %294 : vector<1x128xf32>
    %296 = arith.subf %293, %295 : vector<1x128xf32>
    %297 = vector.broadcast %296 : vector<1x128xf32> to vector<8x128xf32>
    %298 = arith.addf %289, %297 : vector<8x128xf32>
    %cst_100 = arith.constant 0.000000e+00 : f32
    %299 = vector.broadcast %cst_100 : f32 to vector<8x128xf32>
    %300 = arith.maximumf %298, %299 : vector<8x128xf32>
    %c0_101 = arith.constant 0 : index
    %c2_102 = arith.constant 2 : index
    %c0_103 = arith.constant 0 : index
    %c0_104 = arith.constant 0 : index
    %301 = vector.load %arg6[%c0_101, %c2_102, %c0_103, %c0_104] : memref<1x8x8x128xf32, #tpu.memory_space<vmem>>, vector<1x1x8x128xf32>
    %302 = vector.shape_cast %301 : vector<1x1x8x128xf32> to vector<8x128xf32>
    %303 = vector.shape_cast %300 : vector<8x128xf32> to vector<1x1x8x128xf32>
    tpu.vector_store %arg6[%c0_101, %c2_102, %c0_103, %c0_104], %303 {strides = array<i32>} : memref<1x8x8x128xf32, #tpu.memory_space<vmem>>, vector<1x1x8x128xf32>,
    %304 = vector.extract_strided_slice %289 {offsets = [0, 0], sizes = [1, 128], strides = [1, 1]} : vector<8x128xf32> to vector<1x128xf32>
    %305 = vector.extract_strided_slice %289 {offsets = [7, 0], sizes = [1, 128], strides = [1, 1]} : vector<8x128xf32> to vector<1x128xf32>
    %306 = vector.broadcast %7 : f32 to vector<8x128xf32>
    %307 = arith.mulf %156, %306 : vector<8x128xf32>
    %308 = vector.broadcast %15 : f32 to vector<8x128xf32>
    %309 = arith.mulf %153, %308 : vector<8x128xf32>
    %310 = arith.addf %307, %309 : vector<8x128xf32>
    %311 = vector.broadcast %23 : f32 to vector<8x128xf32>
    %312 = arith.mulf %159, %311 : vector<8x128xf32>
    %313 = arith.addf %310, %312 : vector<8x128xf32>
    %314 = vector.broadcast %31 : f32 to vector<8x128xf32>
    %315 = arith.mulf %166, %314 : vector<8x128xf32>
    %316 = arith.addf %313, %315 : vector<8x128xf32>
    %317 = vector.broadcast %39 : f32 to vector<8x128xf32>
    %318 = arith.mulf %163, %317 : vector<8x128xf32>
    %319 = arith.addf %316, %318 : vector<8x128xf32>
    %320 = vector.broadcast %47 : f32 to vector<8x128xf32>
    %321 = arith.mulf %169, %320 : vector<8x128xf32>
    %322 = arith.addf %319, %321 : vector<8x128xf32>
    %323 = vector.broadcast %55 : f32 to vector<8x128xf32>
    %324 = arith.mulf %176, %323 : vector<8x128xf32>
    %325 = arith.addf %322, %324 : vector<8x128xf32>
    %326 = vector.broadcast %63 : f32 to vector<8x128xf32>
    %327 = arith.mulf %173, %326 : vector<8x128xf32>
    %328 = arith.addf %325, %327 : vector<8x128xf32>
    %329 = vector.broadcast %71 : f32 to vector<8x128xf32>
    %330 = arith.mulf %179, %329 : vector<8x128xf32>
    %331 = arith.addf %328, %330 : vector<8x128xf32>
    %332 = vector.broadcast %103 : f32 to vector<1x128xf32>
    %333 = arith.mulf %0, %332 : vector<1x128xf32>
    %334 = vector.broadcast %79 : f32 to vector<1x128xf32>
    %335 = arith.subf %334, %333 : vector<1x128xf32>
    %336 = vector.broadcast %111 : f32 to vector<1x128xf32>
    %337 = arith.mulf %1, %336 : vector<1x128xf32>
    %338 = arith.subf %335, %337 : vector<1x128xf32>
    %339 = vector.broadcast %338 : vector<1x128xf32> to vector<8x128xf32>
    %340 = arith.addf %331, %339 : vector<8x128xf32>
    %cst_105 = arith.constant 0.000000e+00 : f32
    %341 = vector.broadcast %cst_105 : f32 to vector<8x128xf32>
    %342 = arith.maximumf %340, %341 : vector<8x128xf32>
    %c0_106 = arith.constant 0 : index
    %c3_107 = arith.constant 3 : index
    %c0_108 = arith.constant 0 : index
    %c0_109 = arith.constant 0 : index
    %343 = vector.load %arg6[%c0_106, %c3_107, %c0_108, %c0_109] : memref<1x8x8x128xf32, #tpu.memory_space<vmem>>, vector<1x1x8x128xf32>
    %344 = vector.shape_cast %343 : vector<1x1x8x128xf32> to vector<8x128xf32>
    %345 = vector.shape_cast %342 : vector<8x128xf32> to vector<1x1x8x128xf32>
    tpu.vector_store %arg6[%c0_106, %c3_107, %c0_108, %c0_109], %345 {strides = array<i32>} : memref<1x8x8x128xf32, #tpu.memory_space<vmem>>, vector<1x1x8x128xf32>,
    %346 = vector.extract_strided_slice %331 {offsets = [0, 0], sizes = [1, 128], strides = [1, 1]} : vector<8x128xf32> to vector<1x128xf32>
    %347 = vector.extract_strided_slice %331 {offsets = [7, 0], sizes = [1, 128], strides = [1, 1]} : vector<8x128xf32> to vector<1x128xf32>
    %348 = vector.broadcast %8 : f32 to vector<8x128xf32>
    %349 = arith.mulf %156, %348 : vector<8x128xf32>
    %350 = vector.broadcast %16 : f32 to vector<8x128xf32>
    %351 = arith.mulf %153, %350 : vector<8x128xf32>
    %352 = arith.addf %349, %351 : vector<8x128xf32>
    %353 = vector.broadcast %24 : f32 to vector<8x128xf32>
    %354 = arith.mulf %159, %353 : vector<8x128xf32>
    %355 = arith.addf %352, %354 : vector<8x128xf32>
    %356 = vector.broadcast %32 : f32 to vector<8x128xf32>
    %357 = arith.mulf %166, %356 : vector<8x128xf32>
    %358 = arith.addf %355, %357 : vector<8x128xf32>
    %359 = vector.broadcast %40 : f32 to vector<8x128xf32>
    %360 = arith.mulf %163, %359 : vector<8x128xf32>
    %361 = arith.addf %358, %360 : vector<8x128xf32>
    %362 = vector.broadcast %48 : f32 to vector<8x128xf32>
    %363 = arith.mulf %169, %362 : vector<8x128xf32>
    %364 = arith.addf %361, %363 : vector<8x128xf32>
    %365 = vector.broadcast %56 : f32 to vector<8x128xf32>
    %366 = arith.mulf %176, %365 : vector<8x128xf32>
    %367 = arith.addf %364, %366 : vector<8x128xf32>
    %368 = vector.broadcast %64 : f32 to vector<8x128xf32>
    %369 = arith.mulf %173, %368 : vector<8x128xf32>
    %370 = arith.addf %367, %369 : vector<8x128xf32>
    %371 = vector.broadcast %72 : f32 to vector<8x128xf32>
    %372 = arith.mulf %179, %371 : vector<8x128xf32>
    %373 = arith.addf %370, %372 : vector<8x128xf32>
    %374 = vector.broadcast %104 : f32 to vector<1x128xf32>
    %375 = arith.mulf %0, %374 : vector<1x128xf32>
    %376 = vector.broadcast %80 : f32 to vector<1x128xf32>
    %377 = arith.subf %376, %375 : vector<1x128xf32>
    %378 = vector.broadcast %112 : f32 to vector<1x128xf32>
    %379 = arith.mulf %1, %378 : vector<1x128xf32>
    %380 = arith.subf %377, %379 : vector<1x128xf32>
    %381 = vector.broadcast %380 : vector<1x128xf32> to vector<8x128xf32>
    %382 = arith.addf %373, %381 : vector<8x128xf32>
    %cst_110 = arith.constant 0.000000e+00 : f32
    %383 = vector.broadcast %cst_110 : f32 to vector<8x128xf32>
    %384 = arith.maximumf %382, %383 : vector<8x128xf32>
    %c0_111 = arith.constant 0 : index
    %c4_112 = arith.constant 4 : index
    %c0_113 = arith.constant 0 : index
    %c0_114 = arith.constant 0 : index
    %385 = vector.load %arg6[%c0_111, %c4_112, %c0_113, %c0_114] : memref<1x8x8x128xf32, #tpu.memory_space<vmem>>, vector<1x1x8x128xf32>
    %386 = vector.shape_cast %385 : vector<1x1x8x128xf32> to vector<8x128xf32>
    %387 = vector.shape_cast %384 : vector<8x128xf32> to vector<1x1x8x128xf32>
    tpu.vector_store %arg6[%c0_111, %c4_112, %c0_113, %c0_114], %387 {strides = array<i32>} : memref<1x8x8x128xf32, #tpu.memory_space<vmem>>, vector<1x1x8x128xf32>,
    %388 = vector.extract_strided_slice %373 {offsets = [0, 0], sizes = [1, 128], strides = [1, 1]} : vector<8x128xf32> to vector<1x128xf32>
    %389 = vector.extract_strided_slice %373 {offsets = [7, 0], sizes = [1, 128], strides = [1, 1]} : vector<8x128xf32> to vector<1x128xf32>
    %390 = vector.broadcast %9 : f32 to vector<8x128xf32>
    %391 = arith.mulf %156, %390 : vector<8x128xf32>
    %392 = vector.broadcast %17 : f32 to vector<8x128xf32>
    %393 = arith.mulf %153, %392 : vector<8x128xf32>
    %394 = arith.addf %391, %393 : vector<8x128xf32>
    %395 = vector.broadcast %25 : f32 to vector<8x128xf32>
    %396 = arith.mulf %159, %395 : vector<8x128xf32>
    %397 = arith.addf %394, %396 : vector<8x128xf32>
    %398 = vector.broadcast %33 : f32 to vector<8x128xf32>
    %399 = arith.mulf %166, %398 : vector<8x128xf32>
    %400 = arith.addf %397, %399 : vector<8x128xf32>
    %401 = vector.broadcast %41 : f32 to vector<8x128xf32>
    %402 = arith.mulf %163, %401 : vector<8x128xf32>
    %403 = arith.addf %400, %402 : vector<8x128xf32>
    %404 = vector.broadcast %49 : f32 to vector<8x128xf32>
    %405 = arith.mulf %169, %404 : vector<8x128xf32>
    %406 = arith.addf %403, %405 : vector<8x128xf32>
    %407 = vector.broadcast %57 : f32 to vector<8x128xf32>
    %408 = arith.mulf %176, %407 : vector<8x128xf32>
    %409 = arith.addf %406, %408 : vector<8x128xf32>
    %410 = vector.broadcast %65 : f32 to vector<8x128xf32>
    %411 = arith.mulf %173, %410 : vector<8x128xf32>
    %412 = arith.addf %409, %411 : vector<8x128xf32>
    %413 = vector.broadcast %73 : f32 to vector<8x128xf32>
    %414 = arith.mulf %179, %413 : vector<8x128xf32>
    %415 = arith.addf %412, %414 : vector<8x128xf32>
    %416 = vector.broadcast %105 : f32 to vector<1x128xf32>
    %417 = arith.mulf %0, %416 : vector<1x128xf32>
    %418 = vector.broadcast %81 : f32 to vector<1x128xf32>
    %419 = arith.subf %418, %417 : vector<1x128xf32>
    %420 = vector.broadcast %113 : f32 to vector<1x128xf32>
    %421 = arith.mulf %1, %420 : vector<1x128xf32>
    %422 = arith.subf %419, %421 : vector<1x128xf32>
    %423 = vector.broadcast %422 : vector<1x128xf32> to vector<8x128xf32>
    %424 = arith.addf %415, %423 : vector<8x128xf32>
    %cst_115 = arith.constant 0.000000e+00 : f32
    %425 = vector.broadcast %cst_115 : f32 to vector<8x128xf32>
    %426 = arith.maximumf %424, %425 : vector<8x128xf32>
    %c0_116 = arith.constant 0 : index
    %c5_117 = arith.constant 5 : index
    %c0_118 = arith.constant 0 : index
    %c0_119 = arith.constant 0 : index
    %427 = vector.load %arg6[%c0_116, %c5_117, %c0_118, %c0_119] : memref<1x8x8x128xf32, #tpu.memory_space<vmem>>, vector<1x1x8x128xf32>
    %428 = vector.shape_cast %427 : vector<1x1x8x128xf32> to vector<8x128xf32>
    %429 = vector.shape_cast %426 : vector<8x128xf32> to vector<1x1x8x128xf32>
    tpu.vector_store %arg6[%c0_116, %c5_117, %c0_118, %c0_119], %429 {strides = array<i32>} : memref<1x8x8x128xf32, #tpu.memory_space<vmem>>, vector<1x1x8x128xf32>,
    %430 = vector.extract_strided_slice %415 {offsets = [0, 0], sizes = [1, 128], strides = [1, 1]} : vector<8x128xf32> to vector<1x128xf32>
    %431 = vector.extract_strided_slice %415 {offsets = [7, 0], sizes = [1, 128], strides = [1, 1]} : vector<8x128xf32> to vector<1x128xf32>
    %432 = vector.broadcast %10 : f32 to vector<8x128xf32>
    %433 = arith.mulf %156, %432 : vector<8x128xf32>
    %434 = vector.broadcast %18 : f32 to vector<8x128xf32>
    %435 = arith.mulf %153, %434 : vector<8x128xf32>
    %436 = arith.addf %433, %435 : vector<8x128xf32>
    %437 = vector.broadcast %26 : f32 to vector<8x128xf32>
    %438 = arith.mulf %159, %437 : vector<8x128xf32>
    %439 = arith.addf %436, %438 : vector<8x128xf32>
    %440 = vector.broadcast %34 : f32 to vector<8x128xf32>
    %441 = arith.mulf %166, %440 : vector<8x128xf32>
    %442 = arith.addf %439, %441 : vector<8x128xf32>
    %443 = vector.broadcast %42 : f32 to vector<8x128xf32>
    %444 = arith.mulf %163, %443 : vector<8x128xf32>
    %445 = arith.addf %442, %444 : vector<8x128xf32>
    %446 = vector.broadcast %50 : f32 to vector<8x128xf32>
    %447 = arith.mulf %169, %446 : vector<8x128xf32>
    %448 = arith.addf %445, %447 : vector<8x128xf32>
    %449 = vector.broadcast %58 : f32 to vector<8x128xf32>
    %450 = arith.mulf %176, %449 : vector<8x128xf32>
    %451 = arith.addf %448, %450 : vector<8x128xf32>
    %452 = vector.broadcast %66 : f32 to vector<8x128xf32>
    %453 = arith.mulf %173, %452 : vector<8x128xf32>
    %454 = arith.addf %451, %453 : vector<8x128xf32>
    %455 = vector.broadcast %74 : f32 to vector<8x128xf32>
    %456 = arith.mulf %179, %455 : vector<8x128xf32>
    %457 = arith.addf %454, %456 : vector<8x128xf32>
    %458 = vector.broadcast %106 : f32 to vector<1x128xf32>
    %459 = arith.mulf %0, %458 : vector<1x128xf32>
    %460 = vector.broadcast %82 : f32 to vector<1x128xf32>
    %461 = arith.subf %460, %459 : vector<1x128xf32>
    %462 = vector.broadcast %114 : f32 to vector<1x128xf32>
    %463 = arith.mulf %1, %462 : vector<1x128xf32>
    %464 = arith.subf %461, %463 : vector<1x128xf32>
    %465 = vector.broadcast %464 : vector<1x128xf32> to vector<8x128xf32>
    %466 = arith.addf %457, %465 : vector<8x128xf32>
    %cst_120 = arith.constant 0.000000e+00 : f32
    %467 = vector.broadcast %cst_120 : f32 to vector<8x128xf32>
    %468 = arith.maximumf %466, %467 : vector<8x128xf32>
    %c0_121 = arith.constant 0 : index
    %c6_122 = arith.constant 6 : index
    %c0_123 = arith.constant 0 : index
    %c0_124 = arith.constant 0 : index
    %469 = vector.load %arg6[%c0_121, %c6_122, %c0_123, %c0_124] : memref<1x8x8x128xf32, #tpu.memory_space<vmem>>, vector<1x1x8x128xf32>
    %470 = vector.shape_cast %469 : vector<1x1x8x128xf32> to vector<8x128xf32>
    %471 = vector.shape_cast %468 : vector<8x128xf32> to vector<1x1x8x128xf32>
    tpu.vector_store %arg6[%c0_121, %c6_122, %c0_123, %c0_124], %471 {strides = array<i32>} : memref<1x8x8x128xf32, #tpu.memory_space<vmem>>, vector<1x1x8x128xf32>,
    %472 = vector.extract_strided_slice %457 {offsets = [0, 0], sizes = [1, 128], strides = [1, 1]} : vector<8x128xf32> to vector<1x128xf32>
    %473 = vector.extract_strided_slice %457 {offsets = [7, 0], sizes = [1, 128], strides = [1, 1]} : vector<8x128xf32> to vector<1x128xf32>
    %474 = vector.broadcast %11 : f32 to vector<8x128xf32>
    %475 = arith.mulf %156, %474 : vector<8x128xf32>
    %476 = vector.broadcast %19 : f32 to vector<8x128xf32>
    %477 = arith.mulf %153, %476 : vector<8x128xf32>
    %478 = arith.addf %475, %477 : vector<8x128xf32>
    %479 = vector.broadcast %27 : f32 to vector<8x128xf32>
    %480 = arith.mulf %159, %479 : vector<8x128xf32>
    %481 = arith.addf %478, %480 : vector<8x128xf32>
    %482 = vector.broadcast %35 : f32 to vector<8x128xf32>
    %483 = arith.mulf %166, %482 : vector<8x128xf32>
    %484 = arith.addf %481, %483 : vector<8x128xf32>
    %485 = vector.broadcast %43 : f32 to vector<8x128xf32>
    %486 = arith.mulf %163, %485 : vector<8x128xf32>
    %487 = arith.addf %484, %486 : vector<8x128xf32>
    %488 = vector.broadcast %51 : f32 to vector<8x128xf32>
    %489 = arith.mulf %169, %488 : vector<8x128xf32>
    %490 = arith.addf %487, %489 : vector<8x128xf32>
    %491 = vector.broadcast %59 : f32 to vector<8x128xf32>
    %492 = arith.mulf %176, %491 : vector<8x128xf32>
    %493 = arith.addf %490, %492 : vector<8x128xf32>
    %494 = vector.broadcast %67 : f32 to vector<8x128xf32>
    %495 = arith.mulf %173, %494 : vector<8x128xf32>
    %496 = arith.addf %493, %495 : vector<8x128xf32>
    %497 = vector.broadcast %75 : f32 to vector<8x128xf32>
    %498 = arith.mulf %179, %497 : vector<8x128xf32>
    %499 = arith.addf %496, %498 : vector<8x128xf32>
    %500 = vector.broadcast %107 : f32 to vector<1x128xf32>
    %501 = arith.mulf %0, %500 : vector<1x128xf32>
    %502 = vector.broadcast %83 : f32 to vector<1x128xf32>
    %503 = arith.subf %502, %501 : vector<1x128xf32>
    %504 = vector.broadcast %115 : f32 to vector<1x128xf32>
    %505 = arith.mulf %1, %504 : vector<1x128xf32>
    %506 = arith.subf %503, %505 : vector<1x128xf32>
    %507 = vector.broadcast %506 : vector<1x128xf32> to vector<8x128xf32>
    %508 = arith.addf %499, %507 : vector<8x128xf32>
    %cst_125 = arith.constant 0.000000e+00 : f32
    %509 = vector.broadcast %cst_125 : f32 to vector<8x128xf32>
    %510 = arith.maximumf %508, %509 : vector<8x128xf32>
    %c0_126 = arith.constant 0 : index
    %c7_127 = arith.constant 7 : index
    %c0_128 = arith.constant 0 : index
    %c0_129 = arith.constant 0 : index
    %511 = vector.load %arg6[%c0_126, %c7_127, %c0_128, %c0_129] : memref<1x8x8x128xf32, #tpu.memory_space<vmem>>, vector<1x1x8x128xf32>
    %512 = vector.shape_cast %511 : vector<1x1x8x128xf32> to vector<8x128xf32>
    %513 = vector.shape_cast %510 : vector<8x128xf32> to vector<1x1x8x128xf32>
    tpu.vector_store %arg6[%c0_126, %c7_127, %c0_128, %c0_129], %513 {strides = array<i32>} : memref<1x8x8x128xf32, #tpu.memory_space<vmem>>, vector<1x1x8x128xf32>,
    %514 = vector.extract_strided_slice %499 {offsets = [0, 0], sizes = [1, 128], strides = [1, 1]} : vector<8x128xf32> to vector<1x128xf32>
    %515 = vector.extract_strided_slice %499 {offsets = [7, 0], sizes = [1, 128], strides = [1, 1]} : vector<8x128xf32> to vector<1x128xf32>
    %c0_i32_130 = arith.constant 0 : i32
    %516 = arith.cmpi eq, %arg1, %c0_i32_130 : i32
    %517 = arith.extui %516 : i1 to i32
    %c0_i32_131 = arith.constant 0 : i32
    %518 = arith.cmpi ne, %517, %c0_i32_131 : i32
    scf.if %518 {
      %cst_134 = arith.constant 0.000000e+00 : f32
      %522 = arith.subf %cst_134, %84 : f32
      %523 = vector.broadcast %116 : f32 to vector<1x128xf32>
      %524 = arith.mulf %0, %523 : vector<1x128xf32>
      %525 = vector.broadcast %522 : f32 to vector<1x128xf32>
      %526 = arith.addf %525, %524 : vector<1x128xf32>
      %527 = vector.broadcast %124 : f32 to vector<1x128xf32>
      %528 = arith.mulf %1, %527 : vector<1x128xf32>
      %529 = arith.addf %526, %528 : vector<1x128xf32>
      %530 = arith.addf %220, %212 : vector<1x128xf32>
      %531 = arith.addf %530, %529 : vector<1x128xf32>
      %cst_135 = arith.constant 0.000000e+00 : f32
      %532 = vector.broadcast %cst_135 : f32 to vector<1x128xf32>
      %533 = arith.maximumf %531, %532 : vector<1x128xf32>
      %c0_136 = arith.constant 0 : index
      %c0_137 = arith.constant 0 : index
      %c0_138 = arith.constant 0 : index
      %c0_139 = arith.constant 0 : index
      %534 = vector.load %arg6[%c0_136, %c0_137, %c0_138, %c0_139] : memref<1x8x8x128xf32, #tpu.memory_space<vmem>>, vector<1x1x1x128xf32>
      %535 = vector.shape_cast %534 : vector<1x1x1x128xf32> to vector<1x128xf32>
      %536 = vector.shape_cast %533 : vector<1x128xf32> to vector<1x1x1x128xf32>
      tpu.vector_store %arg6[%c0_136, %c0_137, %c0_138, %c0_139], %536 {strides = array<i32>} : memref<1x8x8x128xf32, #tpu.memory_space<vmem>>, vector<1x1x1x128xf32>,
      %cst_140 = arith.constant 0.000000e+00 : f32
      %537 = arith.subf %cst_140, %85 : f32
      %538 = vector.broadcast %117 : f32 to vector<1x128xf32>
      %539 = arith.mulf %0, %538 : vector<1x128xf32>
      %540 = vector.broadcast %537 : f32 to vector<1x128xf32>
      %541 = arith.addf %540, %539 : vector<1x128xf32>
      %542 = vector.broadcast %125 : f32 to vector<1x128xf32>
      %543 = arith.mulf %1, %542 : vector<1x128xf32>
      %544 = arith.addf %541, %543 : vector<1x128xf32>
      %545 = arith.addf %262, %254 : vector<1x128xf32>
      %546 = arith.addf %545, %544 : vector<1x128xf32>
      %cst_141 = arith.constant 0.000000e+00 : f32
      %547 = vector.broadcast %cst_141 : f32 to vector<1x128xf32>
      %548 = arith.maximumf %546, %547 : vector<1x128xf32>
      %c0_142 = arith.constant 0 : index
      %c1_143 = arith.constant 1 : index
      %c0_144 = arith.constant 0 : index
      %c0_145 = arith.constant 0 : index
      %549 = vector.load %arg6[%c0_142, %c1_143, %c0_144, %c0_145] : memref<1x8x8x128xf32, #tpu.memory_space<vmem>>, vector<1x1x1x128xf32>
      %550 = vector.shape_cast %549 : vector<1x1x1x128xf32> to vector<1x128xf32>
      %551 = vector.shape_cast %548 : vector<1x128xf32> to vector<1x1x1x128xf32>
      tpu.vector_store %arg6[%c0_142, %c1_143, %c0_144, %c0_145], %551 {strides = array<i32>} : memref<1x8x8x128xf32, #tpu.memory_space<vmem>>, vector<1x1x1x128xf32>,
      %cst_146 = arith.constant 0.000000e+00 : f32
      %552 = arith.subf %cst_146, %86 : f32
      %553 = vector.broadcast %118 : f32 to vector<1x128xf32>
      %554 = arith.mulf %0, %553 : vector<1x128xf32>
      %555 = vector.broadcast %552 : f32 to vector<1x128xf32>
      %556 = arith.addf %555, %554 : vector<1x128xf32>
      %557 = vector.broadcast %126 : f32 to vector<1x128xf32>
      %558 = arith.mulf %1, %557 : vector<1x128xf32>
      %559 = arith.addf %556, %558 : vector<1x128xf32>
      %560 = arith.addf %304, %296 : vector<1x128xf32>
      %561 = arith.addf %560, %559 : vector<1x128xf32>
      %cst_147 = arith.constant 0.000000e+00 : f32
      %562 = vector.broadcast %cst_147 : f32 to vector<1x128xf32>
      %563 = arith.maximumf %561, %562 : vector<1x128xf32>
      %c0_148 = arith.constant 0 : index
      %c2_149 = arith.constant 2 : index
      %c0_150 = arith.constant 0 : index
      %c0_151 = arith.constant 0 : index
      %564 = vector.load %arg6[%c0_148, %c2_149, %c0_150, %c0_151] : memref<1x8x8x128xf32, #tpu.memory_space<vmem>>, vector<1x1x1x128xf32>
      %565 = vector.shape_cast %564 : vector<1x1x1x128xf32> to vector<1x128xf32>
      %566 = vector.shape_cast %563 : vector<1x128xf32> to vector<1x1x1x128xf32>
      tpu.vector_store %arg6[%c0_148, %c2_149, %c0_150, %c0_151], %566 {strides = array<i32>} : memref<1x8x8x128xf32, #tpu.memory_space<vmem>>, vector<1x1x1x128xf32>,
      %cst_152 = arith.constant 0.000000e+00 : f32
      %567 = arith.subf %cst_152, %87 : f32
      %568 = vector.broadcast %119 : f32 to vector<1x128xf32>
      %569 = arith.mulf %0, %568 : vector<1x128xf32>
      %570 = vector.broadcast %567 : f32 to vector<1x128xf32>
      %571 = arith.addf %570, %569 : vector<1x128xf32>
      %572 = vector.broadcast %127 : f32 to vector<1x128xf32>
      %573 = arith.mulf %1, %572 : vector<1x128xf32>
      %574 = arith.addf %571, %573 : vector<1x128xf32>
      %575 = arith.addf %346, %338 : vector<1x128xf32>
      %576 = arith.addf %575, %574 : vector<1x128xf32>
      %cst_153 = arith.constant 0.000000e+00 : f32
      %577 = vector.broadcast %cst_153 : f32 to vector<1x128xf32>
      %578 = arith.maximumf %576, %577 : vector<1x128xf32>
      %c0_154 = arith.constant 0 : index
      %c3_155 = arith.constant 3 : index
      %c0_156 = arith.constant 0 : index
      %c0_157 = arith.constant 0 : index
      %579 = vector.load %arg6[%c0_154, %c3_155, %c0_156, %c0_157] : memref<1x8x8x128xf32, #tpu.memory_space<vmem>>, vector<1x1x1x128xf32>
      %580 = vector.shape_cast %579 : vector<1x1x1x128xf32> to vector<1x128xf32>
      %581 = vector.shape_cast %578 : vector<1x128xf32> to vector<1x1x1x128xf32>
      tpu.vector_store %arg6[%c0_154, %c3_155, %c0_156, %c0_157], %581 {strides = array<i32>} : memref<1x8x8x128xf32, #tpu.memory_space<vmem>>, vector<1x1x1x128xf32>,
      %cst_158 = arith.constant 0.000000e+00 : f32
      %582 = arith.subf %cst_158, %88 : f32
      %583 = vector.broadcast %120 : f32 to vector<1x128xf32>
      %584 = arith.mulf %0, %583 : vector<1x128xf32>
      %585 = vector.broadcast %582 : f32 to vector<1x128xf32>
      %586 = arith.addf %585, %584 : vector<1x128xf32>
      %587 = vector.broadcast %128 : f32 to vector<1x128xf32>
      %588 = arith.mulf %1, %587 : vector<1x128xf32>
      %589 = arith.addf %586, %588 : vector<1x128xf32>
      %590 = arith.addf %388, %380 : vector<1x128xf32>
      %591 = arith.addf %590, %589 : vector<1x128xf32>
      %cst_159 = arith.constant 0.000000e+00 : f32
      %592 = vector.broadcast %cst_159 : f32 to vector<1x128xf32>
      %593 = arith.maximumf %591, %592 : vector<1x128xf32>
      %c0_160 = arith.constant 0 : index
      %c4_161 = arith.constant 4 : index
      %c0_162 = arith.constant 0 : index
      %c0_163 = arith.constant 0 : index
      %594 = vector.load %arg6[%c0_160, %c4_161, %c0_162, %c0_163] : memref<1x8x8x128xf32, #tpu.memory_space<vmem>>, vector<1x1x1x128xf32>
      %595 = vector.shape_cast %594 : vector<1x1x1x128xf32> to vector<1x128xf32>
      %596 = vector.shape_cast %593 : vector<1x128xf32> to vector<1x1x1x128xf32>
      tpu.vector_store %arg6[%c0_160, %c4_161, %c0_162, %c0_163], %596 {strides = array<i32>} : memref<1x8x8x128xf32, #tpu.memory_space<vmem>>, vector<1x1x1x128xf32>,
      %cst_164 = arith.constant 0.000000e+00 : f32
      %597 = arith.subf %cst_164, %89 : f32
      %598 = vector.broadcast %121 : f32 to vector<1x128xf32>
      %599 = arith.mulf %0, %598 : vector<1x128xf32>
      %600 = vector.broadcast %597 : f32 to vector<1x128xf32>
      %601 = arith.addf %600, %599 : vector<1x128xf32>
      %602 = vector.broadcast %129 : f32 to vector<1x128xf32>
      %603 = arith.mulf %1, %602 : vector<1x128xf32>
      %604 = arith.addf %601, %603 : vector<1x128xf32>
      %605 = arith.addf %430, %422 : vector<1x128xf32>
      %606 = arith.addf %605, %604 : vector<1x128xf32>
      %cst_165 = arith.constant 0.000000e+00 : f32
      %607 = vector.broadcast %cst_165 : f32 to vector<1x128xf32>
      %608 = arith.maximumf %606, %607 : vector<1x128xf32>
      %c0_166 = arith.constant 0 : index
      %c5_167 = arith.constant 5 : index
      %c0_168 = arith.constant 0 : index
      %c0_169 = arith.constant 0 : index
      %609 = vector.load %arg6[%c0_166, %c5_167, %c0_168, %c0_169] : memref<1x8x8x128xf32, #tpu.memory_space<vmem>>, vector<1x1x1x128xf32>
      %610 = vector.shape_cast %609 : vector<1x1x1x128xf32> to vector<1x128xf32>
      %611 = vector.shape_cast %608 : vector<1x128xf32> to vector<1x1x1x128xf32>
      tpu.vector_store %arg6[%c0_166, %c5_167, %c0_168, %c0_169], %611 {strides = array<i32>} : memref<1x8x8x128xf32, #tpu.memory_space<vmem>>, vector<1x1x1x128xf32>,
      %cst_170 = arith.constant 0.000000e+00 : f32
      %612 = arith.subf %cst_170, %90 : f32
      %613 = vector.broadcast %122 : f32 to vector<1x128xf32>
      %614 = arith.mulf %0, %613 : vector<1x128xf32>
      %615 = vector.broadcast %612 : f32 to vector<1x128xf32>
      %616 = arith.addf %615, %614 : vector<1x128xf32>
      %617 = vector.broadcast %130 : f32 to vector<1x128xf32>
      %618 = arith.mulf %1, %617 : vector<1x128xf32>
      %619 = arith.addf %616, %618 : vector<1x128xf32>
      %620 = arith.addf %472, %464 : vector<1x128xf32>
      %621 = arith.addf %620, %619 : vector<1x128xf32>
      %cst_171 = arith.constant 0.000000e+00 : f32
      %622 = vector.broadcast %cst_171 : f32 to vector<1x128xf32>
      %623 = arith.maximumf %621, %622 : vector<1x128xf32>
      %c0_172 = arith.constant 0 : index
      %c6_173 = arith.constant 6 : index
      %c0_174 = arith.constant 0 : index
      %c0_175 = arith.constant 0 : index
      %624 = vector.load %arg6[%c0_172, %c6_173, %c0_174, %c0_175] : memref<1x8x8x128xf32, #tpu.memory_space<vmem>>, vector<1x1x1x128xf32>
      %625 = vector.shape_cast %624 : vector<1x1x1x128xf32> to vector<1x128xf32>
      %626 = vector.shape_cast %623 : vector<1x128xf32> to vector<1x1x1x128xf32>
      tpu.vector_store %arg6[%c0_172, %c6_173, %c0_174, %c0_175], %626 {strides = array<i32>} : memref<1x8x8x128xf32, #tpu.memory_space<vmem>>, vector<1x1x1x128xf32>,
      %cst_176 = arith.constant 0.000000e+00 : f32
      %627 = arith.subf %cst_176, %91 : f32
      %628 = vector.broadcast %123 : f32 to vector<1x128xf32>
      %629 = arith.mulf %0, %628 : vector<1x128xf32>
      %630 = vector.broadcast %627 : f32 to vector<1x128xf32>
      %631 = arith.addf %630, %629 : vector<1x128xf32>
      %632 = vector.broadcast %131 : f32 to vector<1x128xf32>
      %633 = arith.mulf %1, %632 : vector<1x128xf32>
      %634 = arith.addf %631, %633 : vector<1x128xf32>
      %635 = arith.addf %514, %506 : vector<1x128xf32>
      %636 = arith.addf %635, %634 : vector<1x128xf32>
      %cst_177 = arith.constant 0.000000e+00 : f32
      %637 = vector.broadcast %cst_177 : f32 to vector<1x128xf32>
      %638 = arith.maximumf %636, %637 : vector<1x128xf32>
      %c0_178 = arith.constant 0 : index
      %c7_179 = arith.constant 7 : index
      %c0_180 = arith.constant 0 : index
      %c0_181 = arith.constant 0 : index
      %639 = vector.load %arg6[%c0_178, %c7_179, %c0_180, %c0_181] : memref<1x8x8x128xf32, #tpu.memory_space<vmem>>, vector<1x1x1x128xf32>
      %640 = vector.shape_cast %639 : vector<1x1x1x128xf32> to vector<1x128xf32>
      %641 = vector.shape_cast %638 : vector<1x128xf32> to vector<1x1x1x128xf32>
      tpu.vector_store %arg6[%c0_178, %c7_179, %c0_180, %c0_181], %641 {strides = array<i32>} : memref<1x8x8x128xf32, #tpu.memory_space<vmem>>, vector<1x1x1x128xf32>,
    } else {
    }
    %c1_i32_132 = arith.constant 1 : i32
    %519 = arith.cmpi eq, %arg1, %c1_i32_132 : i32
    %520 = arith.extui %519 : i1 to i32
    %c0_i32_133 = arith.constant 0 : i32
    %521 = arith.cmpi ne, %520, %c0_i32_133 : i32
    scf.if %521 {
      %cst_134 = arith.constant 0.000000e+00 : f32
      %522 = arith.subf %cst_134, %92 : f32
      %523 = vector.broadcast %132 : f32 to vector<1x128xf32>
      %524 = arith.mulf %0, %523 : vector<1x128xf32>
      %525 = vector.broadcast %522 : f32 to vector<1x128xf32>
      %526 = arith.addf %525, %524 : vector<1x128xf32>
      %527 = vector.broadcast %140 : f32 to vector<1x128xf32>
      %528 = arith.mulf %1, %527 : vector<1x128xf32>
      %529 = arith.addf %526, %528 : vector<1x128xf32>
      %530 = arith.addf %221, %212 : vector<1x128xf32>
      %531 = arith.addf %530, %529 : vector<1x128xf32>
      %cst_135 = arith.constant 0.000000e+00 : f32
      %532 = vector.broadcast %cst_135 : f32 to vector<1x128xf32>
      %533 = arith.maximumf %531, %532 : vector<1x128xf32>
      %c0_136 = arith.constant 0 : index
      %c0_137 = arith.constant 0 : index
      %c7_138 = arith.constant 7 : index
      %c0_139 = arith.constant 0 : index
      %534 = vector.load %arg6[%c0_136, %c0_137, %c7_138, %c0_139] : memref<1x8x8x128xf32, #tpu.memory_space<vmem>>, vector<1x1x1x128xf32>
      %535 = vector.shape_cast %534 : vector<1x1x1x128xf32> to vector<1x128xf32>
      %536 = vector.shape_cast %533 : vector<1x128xf32> to vector<1x1x1x128xf32>
      tpu.vector_store %arg6[%c0_136, %c0_137, %c7_138, %c0_139], %536 {strides = array<i32>} : memref<1x8x8x128xf32, #tpu.memory_space<vmem>>, vector<1x1x1x128xf32>,
      %cst_140 = arith.constant 0.000000e+00 : f32
      %537 = arith.subf %cst_140, %93 : f32
      %538 = vector.broadcast %133 : f32 to vector<1x128xf32>
      %539 = arith.mulf %0, %538 : vector<1x128xf32>
      %540 = vector.broadcast %537 : f32 to vector<1x128xf32>
      %541 = arith.addf %540, %539 : vector<1x128xf32>
      %542 = vector.broadcast %141 : f32 to vector<1x128xf32>
      %543 = arith.mulf %1, %542 : vector<1x128xf32>
      %544 = arith.addf %541, %543 : vector<1x128xf32>
      %545 = arith.addf %263, %254 : vector<1x128xf32>
      %546 = arith.addf %545, %544 : vector<1x128xf32>
      %cst_141 = arith.constant 0.000000e+00 : f32
      %547 = vector.broadcast %cst_141 : f32 to vector<1x128xf32>
      %548 = arith.maximumf %546, %547 : vector<1x128xf32>
      %c0_142 = arith.constant 0 : index
      %c1_143 = arith.constant 1 : index
      %c7_144 = arith.constant 7 : index
      %c0_145 = arith.constant 0 : index
      %549 = vector.load %arg6[%c0_142, %c1_143, %c7_144, %c0_145] : memref<1x8x8x128xf32, #tpu.memory_space<vmem>>, vector<1x1x1x128xf32>
      %550 = vector.shape_cast %549 : vector<1x1x1x128xf32> to vector<1x128xf32>
      %551 = vector.shape_cast %548 : vector<1x128xf32> to vector<1x1x1x128xf32>
      tpu.vector_store %arg6[%c0_142, %c1_143, %c7_144, %c0_145], %551 {strides = array<i32>} : memref<1x8x8x128xf32, #tpu.memory_space<vmem>>, vector<1x1x1x128xf32>,
      %cst_146 = arith.constant 0.000000e+00 : f32
      %552 = arith.subf %cst_146, %94 : f32
      %553 = vector.broadcast %134 : f32 to vector<1x128xf32>
      %554 = arith.mulf %0, %553 : vector<1x128xf32>
      %555 = vector.broadcast %552 : f32 to vector<1x128xf32>
      %556 = arith.addf %555, %554 : vector<1x128xf32>
      %557 = vector.broadcast %142 : f32 to vector<1x128xf32>
      %558 = arith.mulf %1, %557 : vector<1x128xf32>
      %559 = arith.addf %556, %558 : vector<1x128xf32>
      %560 = arith.addf %305, %296 : vector<1x128xf32>
      %561 = arith.addf %560, %559 : vector<1x128xf32>
      %cst_147 = arith.constant 0.000000e+00 : f32
      %562 = vector.broadcast %cst_147 : f32 to vector<1x128xf32>
      %563 = arith.maximumf %561, %562 : vector<1x128xf32>
      %c0_148 = arith.constant 0 : index
      %c2_149 = arith.constant 2 : index
      %c7_150 = arith.constant 7 : index
      %c0_151 = arith.constant 0 : index
      %564 = vector.load %arg6[%c0_148, %c2_149, %c7_150, %c0_151] : memref<1x8x8x128xf32, #tpu.memory_space<vmem>>, vector<1x1x1x128xf32>
      %565 = vector.shape_cast %564 : vector<1x1x1x128xf32> to vector<1x128xf32>
      %566 = vector.shape_cast %563 : vector<1x128xf32> to vector<1x1x1x128xf32>
      tpu.vector_store %arg6[%c0_148, %c2_149, %c7_150, %c0_151], %566 {strides = array<i32>} : memref<1x8x8x128xf32, #tpu.memory_space<vmem>>, vector<1x1x1x128xf32>,
      %cst_152 = arith.constant 0.000000e+00 : f32
      %567 = arith.subf %cst_152, %95 : f32
      %568 = vector.broadcast %135 : f32 to vector<1x128xf32>
      %569 = arith.mulf %0, %568 : vector<1x128xf32>
      %570 = vector.broadcast %567 : f32 to vector<1x128xf32>
      %571 = arith.addf %570, %569 : vector<1x128xf32>
      %572 = vector.broadcast %143 : f32 to vector<1x128xf32>
      %573 = arith.mulf %1, %572 : vector<1x128xf32>
      %574 = arith.addf %571, %573 : vector<1x128xf32>
      %575 = arith.addf %347, %338 : vector<1x128xf32>
      %576 = arith.addf %575, %574 : vector<1x128xf32>
      %cst_153 = arith.constant 0.000000e+00 : f32
      %577 = vector.broadcast %cst_153 : f32 to vector<1x128xf32>
      %578 = arith.maximumf %576, %577 : vector<1x128xf32>
      %c0_154 = arith.constant 0 : index
      %c3_155 = arith.constant 3 : index
      %c7_156 = arith.constant 7 : index
      %c0_157 = arith.constant 0 : index
      %579 = vector.load %arg6[%c0_154, %c3_155, %c7_156, %c0_157] : memref<1x8x8x128xf32, #tpu.memory_space<vmem>>, vector<1x1x1x128xf32>
      %580 = vector.shape_cast %579 : vector<1x1x1x128xf32> to vector<1x128xf32>
      %581 = vector.shape_cast %578 : vector<1x128xf32> to vector<1x1x1x128xf32>
      tpu.vector_store %arg6[%c0_154, %c3_155, %c7_156, %c0_157], %581 {strides = array<i32>} : memref<1x8x8x128xf32, #tpu.memory_space<vmem>>, vector<1x1x1x128xf32>,
      %cst_158 = arith.constant 0.000000e+00 : f32
      %582 = arith.subf %cst_158, %96 : f32
      %583 = vector.broadcast %136 : f32 to vector<1x128xf32>
      %584 = arith.mulf %0, %583 : vector<1x128xf32>
      %585 = vector.broadcast %582 : f32 to vector<1x128xf32>
      %586 = arith.addf %585, %584 : vector<1x128xf32>
      %587 = vector.broadcast %144 : f32 to vector<1x128xf32>
      %588 = arith.mulf %1, %587 : vector<1x128xf32>
      %589 = arith.addf %586, %588 : vector<1x128xf32>
      %590 = arith.addf %389, %380 : vector<1x128xf32>
      %591 = arith.addf %590, %589 : vector<1x128xf32>
      %cst_159 = arith.constant 0.000000e+00 : f32
      %592 = vector.broadcast %cst_159 : f32 to vector<1x128xf32>
      %593 = arith.maximumf %591, %592 : vector<1x128xf32>
      %c0_160 = arith.constant 0 : index
      %c4_161 = arith.constant 4 : index
      %c7_162 = arith.constant 7 : index
      %c0_163 = arith.constant 0 : index
      %594 = vector.load %arg6[%c0_160, %c4_161, %c7_162, %c0_163] : memref<1x8x8x128xf32, #tpu.memory_space<vmem>>, vector<1x1x1x128xf32>
      %595 = vector.shape_cast %594 : vector<1x1x1x128xf32> to vector<1x128xf32>
      %596 = vector.shape_cast %593 : vector<1x128xf32> to vector<1x1x1x128xf32>
      tpu.vector_store %arg6[%c0_160, %c4_161, %c7_162, %c0_163], %596 {strides = array<i32>} : memref<1x8x8x128xf32, #tpu.memory_space<vmem>>, vector<1x1x1x128xf32>,
      %cst_164 = arith.constant 0.000000e+00 : f32
      %597 = arith.subf %cst_164, %97 : f32
      %598 = vector.broadcast %137 : f32 to vector<1x128xf32>
      %599 = arith.mulf %0, %598 : vector<1x128xf32>
      %600 = vector.broadcast %597 : f32 to vector<1x128xf32>
      %601 = arith.addf %600, %599 : vector<1x128xf32>
      %602 = vector.broadcast %145 : f32 to vector<1x128xf32>
      %603 = arith.mulf %1, %602 : vector<1x128xf32>
      %604 = arith.addf %601, %603 : vector<1x128xf32>
      %605 = arith.addf %431, %422 : vector<1x128xf32>
      %606 = arith.addf %605, %604 : vector<1x128xf32>
      %cst_165 = arith.constant 0.000000e+00 : f32
      %607 = vector.broadcast %cst_165 : f32 to vector<1x128xf32>
      %608 = arith.maximumf %606, %607 : vector<1x128xf32>
      %c0_166 = arith.constant 0 : index
      %c5_167 = arith.constant 5 : index
      %c7_168 = arith.constant 7 : index
      %c0_169 = arith.constant 0 : index
      %609 = vector.load %arg6[%c0_166, %c5_167, %c7_168, %c0_169] : memref<1x8x8x128xf32, #tpu.memory_space<vmem>>, vector<1x1x1x128xf32>
      %610 = vector.shape_cast %609 : vector<1x1x1x128xf32> to vector<1x128xf32>
      %611 = vector.shape_cast %608 : vector<1x128xf32> to vector<1x1x1x128xf32>
      tpu.vector_store %arg6[%c0_166, %c5_167, %c7_168, %c0_169], %611 {strides = array<i32>} : memref<1x8x8x128xf32, #tpu.memory_space<vmem>>, vector<1x1x1x128xf32>,
      %cst_170 = arith.constant 0.000000e+00 : f32
      %612 = arith.subf %cst_170, %98 : f32
      %613 = vector.broadcast %138 : f32 to vector<1x128xf32>
      %614 = arith.mulf %0, %613 : vector<1x128xf32>
      %615 = vector.broadcast %612 : f32 to vector<1x128xf32>
      %616 = arith.addf %615, %614 : vector<1x128xf32>
      %617 = vector.broadcast %146 : f32 to vector<1x128xf32>
      %618 = arith.mulf %1, %617 : vector<1x128xf32>
      %619 = arith.addf %616, %618 : vector<1x128xf32>
      %620 = arith.addf %473, %464 : vector<1x128xf32>
      %621 = arith.addf %620, %619 : vector<1x128xf32>
      %cst_171 = arith.constant 0.000000e+00 : f32
      %622 = vector.broadcast %cst_171 : f32 to vector<1x128xf32>
      %623 = arith.maximumf %621, %622 : vector<1x128xf32>
      %c0_172 = arith.constant 0 : index
      %c6_173 = arith.constant 6 : index
      %c7_174 = arith.constant 7 : index
      %c0_175 = arith.constant 0 : index
      %624 = vector.load %arg6[%c0_172, %c6_173, %c7_174, %c0_175] : memref<1x8x8x128xf32, #tpu.memory_space<vmem>>, vector<1x1x1x128xf32>
      %625 = vector.shape_cast %624 : vector<1x1x1x128xf32> to vector<1x128xf32>
      %626 = vector.shape_cast %623 : vector<1x128xf32> to vector<1x1x1x128xf32>
      tpu.vector_store %arg6[%c0_172, %c6_173, %c7_174, %c0_175], %626 {strides = array<i32>} : memref<1x8x8x128xf32, #tpu.memory_space<vmem>>, vector<1x1x1x128xf32>,
      %cst_176 = arith.constant 0.000000e+00 : f32
      %627 = arith.subf %cst_176, %99 : f32
      %628 = vector.broadcast %139 : f32 to vector<1x128xf32>
      %629 = arith.mulf %0, %628 : vector<1x128xf32>
      %630 = vector.broadcast %627 : f32 to vector<1x128xf32>
      %631 = arith.addf %630, %629 : vector<1x128xf32>
      %632 = vector.broadcast %147 : f32 to vector<1x128xf32>
      %633 = arith.mulf %1, %632 : vector<1x128xf32>
      %634 = arith.addf %631, %633 : vector<1x128xf32>
      %635 = arith.addf %515, %506 : vector<1x128xf32>
      %636 = arith.addf %635, %634 : vector<1x128xf32>
      %cst_177 = arith.constant 0.000000e+00 : f32
      %637 = vector.broadcast %cst_177 : f32 to vector<1x128xf32>
      %638 = arith.maximumf %636, %637 : vector<1x128xf32>
      %c0_178 = arith.constant 0 : index
      %c7_179 = arith.constant 7 : index
      %c7_180 = arith.constant 7 : index
      %c0_181 = arith.constant 0 : index
      %639 = vector.load %arg6[%c0_178, %c7_179, %c7_180, %c0_181] : memref<1x8x8x128xf32, #tpu.memory_space<vmem>>, vector<1x1x1x128xf32>
      %640 = vector.shape_cast %639 : vector<1x1x1x128xf32> to vector<1x128xf32>
      %641 = vector.shape_cast %638 : vector<1x128xf32> to vector<1x1x1x128xf32>
      tpu.vector_store %arg6[%c0_178, %c7_179, %c7_180, %c0_181], %641 {strides = array<i32>} : memref<1x8x8x128xf32, #tpu.memory_space<vmem>>, vector<1x1x1x128xf32>,
    } else {
    }
    return
  }
  func.func @transform_0(%arg0: i32, %arg1: i32) -> (i32, i32) {
    %c0_i32 = arith.constant 0 : i32
    %c0_i32_0 = arith.constant 0 : i32
    %c0_i32_1 = arith.constant 0 : i32
    return %c0_i32, %c0_i32_0 : i32, i32
  }
  func.func @transform_1(%arg0: i32, %arg1: i32) -> (i32, i32, i32) {
    %c0_i32 = arith.constant 0 : i32
    %c0_i32_0 = arith.constant 0 : i32
    %c0_i32_1 = arith.constant 0 : i32
    return %arg0, %c0_i32, %c0_i32_0 : i32, i32, i32
  }
  func.func @transform_2(%arg0: i32, %arg1: i32) -> i32 {
    %c0_i32 = arith.constant 0 : i32
    %c0_i32_0 = arith.constant 0 : i32
    return %c0_i32 : i32
  }
  func.func @transform_3(%arg0: i32, %arg1: i32) -> i32 {
    %c0_i32 = arith.constant 0 : i32
    %c0_i32_0 = arith.constant 0 : i32
    return %c0_i32 : i32
  }
  func.func @transform_4(%arg0: i32, %arg1: i32) -> (i32, i32, i32, i32) {
    %c0_i32 = arith.constant 0 : i32
    %c0_i32_0 = arith.constant 0 : i32
    %c0_i32_1 = arith.constant 0 : i32
    return %arg0, %c0_i32, %arg1, %c0_i32_0 : i32, i32, i32, i32
  }
}

</mosaic_0001>

<llo_original>
// kernel: tpu_custom_call.1
$region0: #{tpu_custom_call.1}
  #allocation0 [shape = 'u32[]', space=smem, size = 0x4, offset = 0x4, fixed_abs, tag = 'smem constant byte address 0x4 - core index']
  #allocation1 [shape = 'u32[144,128]{1,0:T(1,128)}', space=vmem, size = 0x12000, scoped, tag = 'internal scratch']
  %s0 = inlined_call_operand.vmem [shape: f32[8,128], index: 0, kind: input, shape index: {}]
  %s1 = inlined_call_operand.vmem [shape: f32[2,18,128], index: 1, kind: input, shape index: {}]
  %s2 = inlined_call_operand.vmem [shape: f32[72], index: 2, kind: input, shape index: {}]
  %s3 = inlined_call_operand.vmem [shape: f32[72], index: 3, kind: input, shape index: {}]
  %s4 = inlined_call_operand.hbm [shape: f32[2,8,16,128], index: 4, kind: output, shape index: {}]
  %s5 = sld [smem:[#allocation0]]
  $region65: #{tpu_custom_call.1} parent=0
    _
  %s7 = ssub.s32 1, %s5
  %s8 = scalar_select 0, %s7, %s5
  $region1: #{tpu_custom_call.1} parent=0
    #allocation2 [shape = 'u8[512]{0}', space=smem, size = 0x200, scoped, tag = 'input window, operand 2, single buffered']
    #allocation3 [shape = 's32[2]{0}', space=sflag, size = 0x8, scoped, tag = 'scoped memory for tpu_custom_call.1']
    #allocation4 [shape = 's32[2]{0}', space=sflag, size = 0x8, scoped, tag = 'scoped memory for tpu_custom_call.1']
    #allocation5 [shape = 'u8[512]{0}', space=smem, size = 0x200, scoped, tag = 'input window, operand 3, single buffered']
    #allocation6 [shape = 's32[1]{0}', space=sflag, size = 0x4, scoped, tag = 'scoped memory for tpu_custom_call.1']
    #allocation7 [shape = 'u8[65536]{0}', space=vmem, size = 0x10000, scoped, tag = 'output window, operand 0']
    %9 = vsyncpa [#allocation4], 0
    %10 = vsyncpa [#allocation6], 0
    %11 = vsyncpa [#allocation3], 0
    %s12 = scalar_lea.sflag [#allocation3], 1
    %13 = vsyncpa %s12, 0
    loop: start=0, step=1, limit=6
    $region2: #{tpu_custom_call.1} parent=1 // loop_pre_header
      _
    $region3: #{tpu_custom_call.1} parent=1 // loop_header
      %s15 = sphi 0, %s19
      %p16 = scmp.ge.s32.totalorder %s15, 6
      %s22 = sphi 0, %s34
      %s23 = sphi 0, %s30
      %s24 = sphi 0, %s22
      %s25 = sphi 0, %s23
      %s26 = sphi 0, %s24
      %s27 = sphi 0, %s25
      %s35 = sphi 0, %s35
      %s37 = sphi 0, %s35
      %s38 = sphi 0, %s37
      %s52 = sphi 0, %s38
      %s58 = sphi 0, %s60
      %s61 = sphi 0, %s58
      %s62 = sphi 0, %s61
      %s78 = sphi 0, %s62
      %s82 = sphi 0, %s82
      %s84 = sphi 0, %s82
      %s85 = sphi 0, %s84
      %s99 = sphi 0, %s85
      %s103 = sphi 0, %s103
      %s105 = sphi 0, %s103
      %s106 = sphi 0, %s105
      %s120 = sphi 0, %s106
      %s128 = sphi 0, %s130
      %s131 = sphi 0, %s128
      %s132 = sphi 0, %s131
      %s148 = sphi 0, %s132
    $region4: #{tpu_custom_call.1} parent=1 // loop_header_branch
      %18 = sbr.rel (%p16) target = $region8
    $region5: #{tpu_custom_call.1} parent=1 // loop_body
      %s20 = ssub.s32 %s15, 1
      %s21 = ssub.s32 %s15, 2
      %s28 = sadd.s32 1, %s23
      %p29 = scmp.ge.s32.totalorder %s28, 2
      %s30 = scalar_select %p29, 0, %s28
      %s31 = sadd.s32 1, %s22
      %s32 = scalar_select %p29, %s31, %s22
      %p33 = scmp.ge.s32.totalorder %s32, 2
      %s34 = scalar_select %p33, 0, %s32
      %s36 = sadd.s32 %s35, 1
      %p39 = scmp.eq.s32.totalorder %s15, 3
      %p40 = scmp.ne.s32.totalorder %s35, %s37
      %p41 = scmp.eq.s32.totalorder %s15, 0
      %p42 = por %p40, %p41
      %p43 = scmp.ne.s32.totalorder %s35, %s37
      %p44 = scmp.eq.s32.totalorder %s20, 3
      %p45 = por %p43, %p44
      %p46 = scmp.ne.s32.totalorder %s37, %s38
      %p47 = scmp.eq.s32.totalorder %s20, 0
      %p48 = por %p46, %p47
      %p49 = scmp.ne.s32.totalorder %s37, %s38
      %p50 = scmp.eq.s32.totalorder %s21, 3
      %p51 = por %p49, %p50
      %p53 = scmp.ne.s32.totalorder %s38, %s52
      %p54 = scmp.eq.s32.totalorder %s21, 0
      %p55 = por %p53, %p54
      %s56 = ssub.s32 %s22, %s34
      %p57 = scmp.eq.s32.totalorder %s56, 0
      %s59 = sadd.s32 %s58, 1
      %s60 = scalar_select %p57, %s58, %s59
      %p63 = pneg %p57
      %p64 = scmp.eq.s32.totalorder %s15, 3
      %p65 = por %p63, %p64
      %p66 = scmp.ne.s32.totalorder %s58, %s61
      %p67 = scmp.eq.s32.totalorder %s15, 0
      %p68 = por %p66, %p67
      %p69 = scmp.ne.s32.totalorder %s58, %s61
      %p70 = scmp.eq.s32.totalorder %s20, 3
      %p71 = por %p69, %p70
      %p72 = scmp.ne.s32.totalorder %s61, %s62
      %p73 = scmp.eq.s32.totalorder %s20, 0
      %p74 = por %p72, %p73
      %p75 = scmp.ne.s32.totalorder %s61, %s62
      %p76 = scmp.eq.s32.totalorder %s21, 3
      %p77 = por %p75, %p76
      %p79 = scmp.ne.s32.totalorder %s62, %s78
      %p80 = scmp.eq.s32.totalorder %s21, 0
      %p81 = por %p79, %p80
      %s83 = sadd.s32 %s82, 1
      %p86 = scmp.eq.s32.totalorder %s15, 3
      %p87 = scmp.ne.s32.totalorder %s82, %s84
      %p88 = scmp.eq.s32.totalorder %s15, 0
      %p89 = por %p87, %p88
      %p90 = scmp.ne.s32.totalorder %s82, %s84
      %p91 = scmp.eq.s32.totalorder %s20, 3
      %p92 = por %p90, %p91
      %p93 = scmp.ne.s32.totalorder %s84, %s85
      %p94 = scmp.eq.s32.totalorder %s20, 0
      %p95 = por %p93, %p94
      %p96 = scmp.ne.s32.totalorder %s84, %s85
      %p97 = scmp.eq.s32.totalorder %s21, 3
      %p98 = por %p96, %p97
      %p100 = scmp.ne.s32.totalorder %s85, %s99
      %p101 = scmp.eq.s32.totalorder %s21, 0
      %p102 = por %p100, %p101
      %s104 = sadd.s32 %s103, 1
      %p107 = scmp.eq.s32.totalorder %s15, 3
      %p108 = scmp.ne.s32.totalorder %s103, %s105
      %p109 = scmp.eq.s32.totalorder %s15, 0
      %p110 = por %p108, %p109
      %p111 = scmp.ne.s32.totalorder %s103, %s105
      %p112 = scmp.eq.s32.totalorder %s20, 3
      %p113 = por %p111, %p112
      %p114 = scmp.ne.s32.totalorder %s105, %s106
      %p115 = scmp.eq.s32.totalorder %s20, 0
      %p116 = por %p114, %p115
      %p117 = scmp.ne.s32.totalorder %s105, %s106
      %p118 = scmp.eq.s32.totalorder %s21, 3
      %p119 = por %p117, %p118
      %p121 = scmp.ne.s32.totalorder %s106, %s120
      %p122 = scmp.eq.s32.totalorder %s21, 0
      %p123 = por %p121, %p122
      %s124 = ssub.s32 %s22, %s34
      %s125 = ssub.s32 %s23, %s30
      %s126 = sor.u32 %s124, %s125
      %p127 = scmp.eq.s32.totalorder %s126, 0
      %s129 = sadd.s32 %s128, 1
      %s130 = scalar_select %p127, %s128, %s129
      %p133 = pneg %p127
      %p134 = scmp.eq.s32.totalorder %s15, 3
      %p135 = por %p133, %p134
      %p136 = scmp.ne.s32.totalorder %s128, %s131
      %p137 = scmp.eq.s32.totalorder %s15, 0
      %p138 = por %p136, %p137
      %p139 = scmp.ne.s32.totalorder %s128, %s131
      %p140 = scmp.eq.s32.totalorder %s20, 3
      %p141 = por %p139, %p140
      %p142 = scmp.ne.s32.totalorder %s131, %s132
      %p143 = scmp.eq.s32.totalorder %s20, 0
      %p144 = por %p142, %p143
      %p145 = scmp.ne.s32.totalorder %s131, %s132
      %p146 = scmp.eq.s32.totalorder %s21, 3
      %p147 = por %p145, %p146
      %p149 = scmp.ne.s32.totalorder %s132, %s148
      %p150 = scmp.eq.s32.totalorder %s21, 0
      %p151 = por %p149, %p150
      %p152 = scmp.le.s32.totalorder 1, %s15
      %p153 = scmp.lt.s32.totalorder %s15, 5
      %p154 = pnand %p152, %p153
      %p155 = pneg %p154
      // Predicated region
      $region9: #{tpu_custom_call.1} parent=5 // pred_check
        _
      $region10: #{tpu_custom_call.1} parent=5 // pred_check_branch
        %157 = sbr.rel (%p154) target = $region12
      $region11: #{tpu_custom_call.1} parent=5 // pred_region
        %s158 = ssub.s32 %s15, 1
        // Predicated region
        $region13: #{tpu_custom_call.1} parent=11 // pred_check
          %p159 = pneg %p48
        $region14: #{tpu_custom_call.1} parent=11 // pred_check_branch
          %161 = sbr.rel (%p159) target = $region16
        $region15: #{tpu_custom_call.1} parent=11 // pred_region
          _
        $region16: #{tpu_custom_call.1} parent=11 // pred_fallthru
          _
        // Predicated region
        $region17: #{tpu_custom_call.1} parent=11 // pred_check
          %p162 = pneg %p95
        $region18: #{tpu_custom_call.1} parent=11 // pred_check_branch
          %164 = sbr.rel (%p162) target = $region20
        $region19: #{tpu_custom_call.1} parent=11 // pred_region
          %s166 = ssub.s32 16, 16
          %167 = vsyncadd [#allocation4], %s166
          %s169 = sshll.u32 %s2, 4
          %s170 = int_to_ptr.vmem [resolvable:$true] %s169
          %172 = dma.vmem_to_smem %s170, 16, [#allocation2], [#allocation4]
        $region20: #{tpu_custom_call.1} parent=11 // pred_fallthru
          _
        // Predicated region
        $region21: #{tpu_custom_call.1} parent=11 // pred_check
          %p173 = pneg %p116
        $region22: #{tpu_custom_call.1} parent=11 // pred_check_branch
          %175 = sbr.rel (%p173) target = $region24
        $region23: #{tpu_custom_call.1} parent=11 // pred_region
          %s177 = ssub.s32 16, 16
          %178 = vsyncadd [#allocation6], %s177
          %s180 = sshll.u32 %s3, 4
          %s181 = int_to_ptr.vmem [resolvable:$true] %s180
          %183 = dma.vmem_to_smem %s181, 16, [#allocation5], [#allocation6]
        $region24: #{tpu_custom_call.1} parent=11 // pred_fallthru
          _
      $region12: #{tpu_custom_call.1} parent=5 // pred_fallthru
        _
      %p184 = scmp.lt.s32.totalorder %s15, 4
      // Predicated region
      $region25: #{tpu_custom_call.1} parent=5 // pred_check
        %p185 = pneg %p184
      $region26: #{tpu_custom_call.1} parent=5 // pred_check_branch
        %187 = sbr.rel (%p185) target = $region28
      $region27: #{tpu_custom_call.1} parent=5 // pred_region
        // Predicated region
        $region29: #{tpu_custom_call.1} parent=27 // pred_check
          %p188 = pneg %p68
        $region30: #{tpu_custom_call.1} parent=27 // pred_check_branch
          %190 = sbr.rel (%p188) target = $region32
        $region31: #{tpu_custom_call.1} parent=27 // pred_region
          %p191 = scmp.lt.s32.totalorder %s22, 1
          %s192 = scalar_select %p191, %s22, 1
          %s193 = smul.addr %s192, 3
          %s194 = smul.addr %s193, 8
          %s195 = scalar_lea.vmem %s1, %s194
        $region32: #{tpu_custom_call.1} parent=27 // pred_fallthru
          _
      $region28: #{tpu_custom_call.1} parent=5 // pred_fallthru
        _
      %p196 = scmp.le.s32.totalorder 1, %s15
      %p197 = scmp.lt.s32.totalorder %s15, 5
      %p198 = pnand %p196, %p197
      %p199 = pneg %p198
      // Predicated region
      $region33: #{tpu_custom_call.1} parent=5 // pred_check
        _
      $region34: #{tpu_custom_call.1} parent=5 // pred_check_branch
        %201 = sbr.rel (%p198) target = $region36
      $region35: #{tpu_custom_call.1} parent=5 // pred_region
        %s202 = ssub.s32 %s15, 1
        // Predicated region
        $region37: #{tpu_custom_call.1} parent=35 // pred_check
          %p203 = pneg %p95
        $region38: #{tpu_custom_call.1} parent=35 // pred_check_branch
          %205 = sbr.rel (%p203) target = $region40
        $region39: #{tpu_custom_call.1} parent=35 // pred_region
          %206 = dma.done [#allocation4], 16
        $region40: #{tpu_custom_call.1} parent=35 // pred_fallthru
          _
        // Predicated region
        $region41: #{tpu_custom_call.1} parent=35 // pred_check
          %p207 = pneg %p116
        $region42: #{tpu_custom_call.1} parent=35 // pred_check_branch
          %209 = sbr.rel (%p207) target = $region44
        $region43: #{tpu_custom_call.1} parent=35 // pred_region
          %210 = dma.done [#allocation6], 16
        $region44: #{tpu_custom_call.1} parent=35 // pred_fallthru
          _
        %211 = sfence
        %p212 = pneg %p48
        %p213 = pneg %p45
        %p214 = scmp.lt.s32.totalorder %s24, 1
        %s215 = scalar_select %p214, %s24, 1
        %s216 = smul.addr %s215, 3
        %s217 = smul.addr %s216, 8
        %s218 = scalar_lea.vmem %s1, %s217
        %p219 = pneg %p74
        %p220 = pneg %p71
        %p221 = pneg %p95
        %p222 = pneg %p92
        %p223 = pneg %p116
        %p224 = pneg %p113
        %p225 = pneg %p144
        %p226 = pneg %p141
        %s227 = sand.u32 %s131, 1
        %s228 = scalar_lea.sflag [#allocation3], %s227
        %s229 = sand.u32 %s131, 1
        %s230 = smul.addr %s229, 64
        %s231 = scalar_lea.vmem [#allocation7], %s230
        %p232 = scmp.lt.s32.totalorder %s24, 1
        %s233 = scalar_select %p232, %s24, 1
        %s234 = smul.addr %s233, 3
        %s235 = smul.addr %s234, 8
        %s236 = scalar_lea.vmem %s1, %s235
        %v237 = vld [vmem:[%s0] sm:$0x1]
        %v238 = vld [vmem:[%s0 + $0x1] sm:$0x1]
        %v239 = vld [vmem:[%s0 + $0x2] sm:$0x1]
        %v240 = vld [vmem:[%s0 + $0x3] sm:$0x1]
        %s241 = sld [smem:[#allocation2]]
        %s242 = sld [smem:[#allocation2 + $0x1]]
        %s243 = sld [smem:[#allocation2 + $0x2]]
        %s244 = sld [smem:[#allocation2 + $0x3]]
        %s245 = sld [smem:[#allocation2 + $0x4]]
        %s246 = sld [smem:[#allocation2 + $0x5]]
        %s247 = sld [smem:[#allocation2 + $0x6]]
        %s248 = sld [smem:[#allocation2 + $0x7]]
        %s249 = sld [smem:[#allocation2 + $0x8]]
        %s250 = sld [smem:[#allocation2 + $0x9]]
        %s251 = sld [smem:[#allocation2 + $0xa]]
        %s252 = sld [smem:[#allocation2 + $0xb]]
        %s253 = sld [smem:[#allocation2 + $0xc]]
        %s254 = sld [smem:[#allocation2 + $0xd]]
        %s255 = sld [smem:[#allocation2 + $0xe]]
        %s256 = sld [smem:[#allocation2 + $0xf]]
        %s257 = sld [smem:[#allocation2 + $0x10]]
        %s258 = sld [smem:[#allocation2 + $0x11]]
        %s259 = sld [smem:[#allocation2 + $0x12]]
        %s260 = sld [smem:[#allocation2 + $0x13]]
        %s261 = sld [smem:[#allocation2 + $0x14]]
        %s262 = sld [smem:[#allocation2 + $0x15]]
        %s263 = sld [smem:[#allocation2 + $0x16]]
        %s264 = sld [smem:[#allocation2 + $0x17]]
        %s265 = sld [smem:[#allocation2 + $0x18]]
        %s266 = sld [smem:[#allocation2 + $0x19]]
        %s267 = sld [smem:[#allocation2 + $0x1a]]
        %s268 = sld [smem:[#allocation2 + $0x1b]]
        %s269 = sld [smem:[#allocation2 + $0x1c]]
        %s270 = sld [smem:[#allocation2 + $0x1d]]
        %s271 = sld [smem:[#allocation2 + $0x1e]]
        %s272 = sld [smem:[#allocation2 + $0x1f]]
        %s273 = sld [smem:[#allocation2 + $0x20]]
        %s274 = sld [smem:[#allocation2 + $0x21]]
        %s275 = sld [smem:[#allocation2 + $0x22]]
        %s276 = sld [smem:[#allocation2 + $0x23]]
        %s277 = sld [smem:[#allocation2 + $0x24]]
        %s278 = sld [smem:[#allocation2 + $0x25]]
        %s279 = sld [smem:[#allocation2 + $0x26]]
        %s280 = sld [smem:[#allocation2 + $0x27]]
        %s281 = sld [smem:[#allocation2 + $0x28]]
        %s282 = sld [smem:[#allocation2 + $0x29]]
        %s283 = sld [smem:[#allocation2 + $0x2a]]
        %s284 = sld [smem:[#allocation2 + $0x2b]]
        %s285 = sld [smem:[#allocation2 + $0x2c]]
        %s286 = sld [smem:[#allocation2 + $0x2d]]
        %s287 = sld [smem:[#allocation2 + $0x2e]]
        %s288 = sld [smem:[#allocation2 + $0x2f]]
        %s289 = sld [smem:[#allocation2 + $0x30]]
        %s290 = sld [smem:[#allocation2 + $0x31]]
        %s291 = sld [smem:[#allocation2 + $0x32]]
        %s292 = sld [smem:[#allocation2 + $0x33]]
        %s293 = sld [smem:[#allocation2 + $0x34]]
        %s294 = sld [smem:[#allocation2 + $0x35]]
        %s295 = sld [smem:[#allocation2 + $0x36]]
        %s296 = sld [smem:[#allocation2 + $0x37]]
        %s297 = sld [smem:[#allocation2 + $0x38]]
        %s298 = sld [smem:[#allocation2 + $0x39]]
        %s299 = sld [smem:[#allocation2 + $0x3a]]
        %s300 = sld [smem:[#allocation2 + $0x3b]]
        %s301 = sld [smem:[#allocation2 + $0x3c]]
        %s302 = sld [smem:[#allocation2 + $0x3d]]
        %s303 = sld [smem:[#allocation2 + $0x3e]]
        %s304 = sld [smem:[#allocation2 + $0x3f]]
        %s305 = sld [smem:[#allocation2 + $0x40]]
        %s306 = sld [smem:[#allocation2 + $0x41]]
        %s307 = sld [smem:[#allocation2 + $0x42]]
        %s308 = sld [smem:[#allocation2 + $0x43]]
        %s309 = sld [smem:[#allocation2 + $0x44]]
        %s310 = sld [smem:[#allocation2 + $0x45]]
        %s311 = sld [smem:[#allocation2 + $0x46]]
        %s312 = sld [smem:[#allocation2 + $0x47]]
        %s313 = sld [smem:[#allocation5]]
        %s314 = sld [smem:[#allocation5 + $0x1]]
        %s315 = sld [smem:[#allocation5 + $0x2]]
        %s316 = sld [smem:[#allocation5 + $0x3]]
        %s317 = sld [smem:[#allocation5 + $0x4]]
        %s318 = sld [smem:[#allocation5 + $0x5]]
        %s319 = sld [smem:[#allocation5 + $0x6]]
        %s320 = sld [smem:[#allocation5 + $0x7]]
        %s321 = sld [smem:[#allocation5 + $0x8]]
        %s322 = sld [smem:[#allocation5 + $0x9]]
        %s323 = sld [smem:[#allocation5 + $0xa]]
        %s324 = sld [smem:[#allocation5 + $0xb]]
        %s325 = sld [smem:[#allocation5 + $0xc]]
        %s326 = sld [smem:[#allocation5 + $0xd]]
        %s327 = sld [smem:[#allocation5 + $0xe]]
        %s328 = sld [smem:[#allocation5 + $0xf]]
        %s329 = sld [smem:[#allocation5 + $0x10]]
        %s330 = sld [smem:[#allocation5 + $0x11]]
        %s331 = sld [smem:[#allocation5 + $0x12]]
        %s332 = sld [smem:[#allocation5 + $0x13]]
        %s333 = sld [smem:[#allocation5 + $0x14]]
        %s334 = sld [smem:[#allocation5 + $0x15]]
        %s335 = sld [smem:[#allocation5 + $0x16]]
        %s336 = sld [smem:[#allocation5 + $0x17]]
        %s337 = sld [smem:[#allocation5 + $0x18]]
        %s338 = sld [smem:[#allocation5 + $0x19]]
        %s339 = sld [smem:[#allocation5 + $0x1a]]
        %s340 = sld [smem:[#allocation5 + $0x1b]]
        %s341 = sld [smem:[#allocation5 + $0x1c]]
        %s342 = sld [smem:[#allocation5 + $0x1d]]
        %s343 = sld [smem:[#allocation5 + $0x1e]]
        %s344 = sld [smem:[#allocation5 + $0x1f]]
        %s345 = sld [smem:[#allocation5 + $0x20]]
        %s346 = sld [smem:[#allocation5 + $0x21]]
        %s347 = sld [smem:[#allocation5 + $0x22]]
        %s348 = sld [smem:[#allocation5 + $0x23]]
        %s349 = sld [smem:[#allocation5 + $0x24]]
        %s350 = sld [smem:[#allocation5 + $0x25]]
        %s351 = sld [smem:[#allocation5 + $0x26]]
        %s352 = sld [smem:[#allocation5 + $0x27]]
        %s353 = sld [smem:[#allocation5 + $0x28]]
        %s354 = sld [smem:[#allocation5 + $0x29]]
        %s355 = sld [smem:[#allocation5 + $0x2a]]
        %s356 = sld [smem:[#allocation5 + $0x2b]]
        %s357 = sld [smem:[#allocation5 + $0x2c]]
        %s358 = sld [smem:[#allocation5 + $0x2d]]
        %s359 = sld [smem:[#allocation5 + $0x2e]]
        %s360 = sld [smem:[#allocation5 + $0x2f]]
        %s361 = sld [smem:[#allocation5 + $0x30]]
        %s362 = sld [smem:[#allocation5 + $0x31]]
        %s363 = sld [smem:[#allocation5 + $0x32]]
        %s364 = sld [smem:[#allocation5 + $0x33]]
        %s365 = sld [smem:[#allocation5 + $0x34]]
        %s366 = sld [smem:[#allocation5 + $0x35]]
        %s367 = sld [smem:[#allocation5 + $0x36]]
        %s368 = sld [smem:[#allocation5 + $0x37]]
        %s369 = sld [smem:[#allocation5 + $0x38]]
        %s370 = sld [smem:[#allocation5 + $0x39]]
        %s371 = sld [smem:[#allocation5 + $0x3a]]
        %s372 = sld [smem:[#allocation5 + $0x3b]]
        %s373 = sld [smem:[#allocation5 + $0x3c]]
        %s374 = sld [smem:[#allocation5 + $0x3d]]
        %s375 = sld [smem:[#allocation5 + $0x3e]]
        %s376 = sld [smem:[#allocation5 + $0x3f]]
        %s377 = sld [smem:[#allocation5 + $0x40]]
        %s378 = sld [smem:[#allocation5 + $0x41]]
        %s379 = sld [smem:[#allocation5 + $0x42]]
        %s380 = sld [smem:[#allocation5 + $0x43]]
        %s381 = sld [smem:[#allocation5 + $0x44]]
        %s382 = sld [smem:[#allocation5 + $0x45]]
        %s383 = sld [smem:[#allocation5 + $0x46]]
        %s384 = sld [smem:[#allocation5 + $0x47]]
        %s385 = smul.u32 %s25, 8
        %s386 = scalar_lea.vmem %s236, %s385
        %v387 = vld [vmem:[%s386] sm:$0xff]
        %388 = vrot.lane.b32.xlu0 %v387, 1
        %v389 = vpop.permute.xlu0 %388
        %v390 = vlaneseq
        %v391 = vshrl.u32 %v390, 7
        %v392 = vsub.s32 0, %v391
        %v393 = vrot.slane %v239, %v392
        %v394 = vmul.f32 %v389, %v393
        %395 = vrot.lane.b32.xlu0 %v387, 127
        %v396 = vpop.permute.xlu0 %395
        %v397 = vlaneseq
        %v398 = vshrl.u32 %v397, 7
        %v399 = vsub.s32 0, %v398
        %v400 = vrot.slane %v240, %v399
        %v401 = vmul.f32 %v396, %v400
        %s402 = sadd.s32 %s385, 1
        %s403 = scalar_lea.vmem %s236, %s402
        %v404 = vld [vmem:[%s403] sm:$0xff]
        %405 = vrot.lane.b32.xlu0 %v404, 1
        %v406 = vpop.permute.xlu0 %405
        %v407 = vmul.f32 %v406, %v393
        %408 = vrot.lane.b32.xlu0 %v404, 127
        %v409 = vpop.permute.xlu0 %408
        %v410 = vmul.f32 %v409, %v400
        %s411 = sadd.s32 %s385, 2
        %s412 = scalar_lea.vmem %s236, %s411
        %v413 = vld [vmem:[%s412] sm:$0xff]
        %414 = vrot.lane.b32.xlu0 %v413, 1
        %v415 = vpop.permute.xlu0 %414
        %v416 = vmul.f32 %v415, %v393
        %417 = vrot.lane.b32.xlu0 %v413, 127
        %v418 = vpop.permute.xlu0 %417
        %v419 = vmul.f32 %v418, %v400
        %v420 = vstv %s241
        %v421 = vmul.f32 %v394, %v420
        %v422 = vstv %s249
        %v423 = vmul.f32 %v387, %v422
        %v424 = vadd.f32 %v421, %v423
        %v425 = vstv %s257
        %v426 = vmul.f32 %v401, %v425
        %v427 = vadd.f32 %v424, %v426
        %v428 = vstv %s265
        %v429 = vmul.f32 %v407, %v428
        %v430 = vadd.f32 %v427, %v429
        %v431 = vstv %s273
        %v432 = vmul.f32 %v404, %v431
        %v433 = vadd.f32 %v430, %v432
        %v434 = vstv %s281
        %v435 = vmul.f32 %v410, %v434
        %v436 = vadd.f32 %v433, %v435
        %v437 = vstv %s289
        %v438 = vmul.f32 %v416, %v437
        %v439 = vadd.f32 %v436, %v438
        %v440 = vstv %s297
        %v441 = vmul.f32 %v413, %v440
        %v442 = vadd.f32 %v439, %v441
        %v443 = vstv %s305
        %v444 = vmul.f32 %v419, %v443
        %v445 = vadd.f32 %v442, %v444
        %v446 = vstv %s337
        %v447 = vmul.f32 %v237, %v446
        %v448 = vstv %s313
        %v449 = vsub.f32 %v448, %v447
        %v450 = vstv %s345
        %v451 = vmul.f32 %v238, %v450
        %v452 = vsub.f32 %v449, %v451
        %v453 = vlaneseq
        %v454 = vshrl.u32 %v453, 7
        %v455 = vsub.s32 0, %v454
        %v456 = vrot.slane %v452, %v455
        %v457 = vadd.f32 %v445, %v456
        %v458 = vmax.f32 %v457, 0.0
        %459 = vst [vmem:[%s231] sm:$0xff] %v458
        %v460 = vstv %s242
        %v461 = vmul.f32 %v394, %v460
        %v462 = vstv %s250
        %v463 = vmul.f32 %v387, %v462
        %v464 = vadd.f32 %v461, %v463
        %v465 = vstv %s258
        %v466 = vmul.f32 %v401, %v465
        %v467 = vadd.f32 %v464, %v466
        %v468 = vstv %s266
        %v469 = vmul.f32 %v407, %v468
        %v470 = vadd.f32 %v467, %v469
        %v471 = vstv %s274
        %v472 = vmul.f32 %v404, %v471
        %v473 = vadd.f32 %v470, %v472
        %v474 = vstv %s282
        %v475 = vmul.f32 %v410, %v474
        %v476 = vadd.f32 %v473, %v475
        %v477 = vstv %s290
        %v478 = vmul.f32 %v416, %v477
        %v479 = vadd.f32 %v476, %v478
        %v480 = vstv %s298
        %v481 = vmul.f32 %v413, %v480
        %v482 = vadd.f32 %v479, %v481
        %v483 = vstv %s306
        %v484 = vmul.f32 %v419, %v483
        %v485 = vadd.f32 %v482, %v484
        %v486 = vstv %s338
        %v487 = vmul.f32 %v237, %v486
        %v488 = vstv %s314
        %v489 = vsub.f32 %v488, %v487
        %v490 = vstv %s346
        %v491 = vmul.f32 %v238, %v490
        %v492 = vsub.f32 %v489, %v491
        %v493 = vlaneseq
        %v494 = vshrl.u32 %v493, 7
        %v495 = vsub.s32 0, %v494
        %v496 = vrot.slane %v492, %v495
        %v497 = vadd.f32 %v485, %v496
        %v498 = vmax.f32 %v497, 0.0
        %s499 = scalar_lea.vmem %s231, 8 [#allocation7]
        %500 = vst [vmem:[%s499] sm:$0xff] %v498
        %v501 = vstv %s243
        %v502 = vmul.f32 %v394, %v501
        %v503 = vstv %s251
        %v504 = vmul.f32 %v387, %v503
        %v505 = vadd.f32 %v502, %v504
        %v506 = vstv %s259
        %v507 = vmul.f32 %v401, %v506
        %v508 = vadd.f32 %v505, %v507
        %v509 = vstv %s267
        %v510 = vmul.f32 %v407, %v509
        %v511 = vadd.f32 %v508, %v510
        %v512 = vstv %s275
        %v513 = vmul.f32 %v404, %v512
        %v514 = vadd.f32 %v511, %v513
        %v515 = vstv %s283
        %v516 = vmul.f32 %v410, %v515
        %v517 = vadd.f32 %v514, %v516
        %v518 = vstv %s291
        %v519 = vmul.f32 %v416, %v518
        %v520 = vadd.f32 %v517, %v519
        %v521 = vstv %s299
        %v522 = vmul.f32 %v413, %v521
        %v523 = vadd.f32 %v520, %v522
        %v524 = vstv %s307
        %v525 = vmul.f32 %v419, %v524
        %v526 = vadd.f32 %v523, %v525
        %v527 = vstv %s339
        %v528 = vmul.f32 %v237, %v527
        %v529 = vstv %s315
        %v530 = vsub.f32 %v529, %v528
        %v531 = vstv %s347
        %v532 = vmul.f32 %v238, %v531
        %v533 = vsub.f32 %v530, %v532
        %v534 = vlaneseq
        %v535 = vshrl.u32 %v534, 7
        %v536 = vsub.s32 0, %v535
        %v537 = vrot.slane %v533, %v536
        %v538 = vadd.f32 %v526, %v537
        %v539 = vmax.f32 %v538, 0.0
        %s540 = scalar_lea.vmem %s231, 16 [#allocation7]
        %541 = vst [vmem:[%s540] sm:$0xff] %v539
        %v542 = vstv %s244
        %v543 = vmul.f32 %v394, %v542
        %v544 = vstv %s252
        %v545 = vmul.f32 %v387, %v544
        %v546 = vadd.f32 %v543, %v545
        %v547 = vstv %s260
        %v548 = vmul.f32 %v401, %v547
        %v549 = vadd.f32 %v546, %v548
        %v550 = vstv %s268
        %v551 = vmul.f32 %v407, %v550
        %v552 = vadd.f32 %v549, %v551
        %v553 = vstv %s276
        %v554 = vmul.f32 %v404, %v553
        %v555 = vadd.f32 %v552, %v554
        %v556 = vstv %s284
        %v557 = vmul.f32 %v410, %v556
        %v558 = vadd.f32 %v555, %v557
        %v559 = vstv %s292
        %v560 = vmul.f32 %v416, %v559
        %v561 = vadd.f32 %v558, %v560
        %v562 = vstv %s300
        %v563 = vmul.f32 %v413, %v562
        %v564 = vadd.f32 %v561, %v563
        %v565 = vstv %s308
        %v566 = vmul.f32 %v419, %v565
        %v567 = vadd.f32 %v564, %v566
        %v568 = vstv %s340
        %v569 = vmul.f32 %v237, %v568
        %v570 = vstv %s316
        %v571 = vsub.f32 %v570, %v569
        %v572 = vstv %s348
        %v573 = vmul.f32 %v238, %v572
        %v574 = vsub.f32 %v571, %v573
        %v575 = vlaneseq
        %v576 = vshrl.u32 %v575, 7
        %v577 = vsub.s32 0, %v576
        %v578 = vrot.slane %v574, %v577
        %v579 = vadd.f32 %v567, %v578
        %v580 = vmax.f32 %v579, 0.0
        %s581 = scalar_lea.vmem %s231, 24 [#allocation7]
        %582 = vst [vmem:[%s581] sm:$0xff] %v580
        %v583 = vstv %s245
        %v584 = vmul.f32 %v394, %v583
        %v585 = vstv %s253
        %v586 = vmul.f32 %v387, %v585
        %v587 = vadd.f32 %v584, %v586
        %v588 = vstv %s261
        %v589 = vmul.f32 %v401, %v588
        %v590 = vadd.f32 %v587, %v589
        %v591 = vstv %s269
        %v592 = vmul.f32 %v407, %v591
        %v593 = vadd.f32 %v590, %v592
        %v594 = vstv %s277
        %v595 = vmul.f32 %v404, %v594
        %v596 = vadd.f32 %v593, %v595
        %v597 = vstv %s285
        %v598 = vmul.f32 %v410, %v597
        %v599 = vadd.f32 %v596, %v598
        %v600 = vstv %s293
        %v601 = vmul.f32 %v416, %v600
        %v602 = vadd.f32 %v599, %v601
        %v603 = vstv %s301
        %v604 = vmul.f32 %v413, %v603
        %v605 = vadd.f32 %v602, %v604
        %v606 = vstv %s309
        %v607 = vmul.f32 %v419, %v606
        %v608 = vadd.f32 %v605, %v607
        %v609 = vstv %s341
        %v610 = vmul.f32 %v237, %v609
        %v611 = vstv %s317
        %v612 = vsub.f32 %v611, %v610
        %v613 = vstv %s349
        %v614 = vmul.f32 %v238, %v613
        %v615 = vsub.f32 %v612, %v614
        %v616 = vlaneseq
        %v617 = vshrl.u32 %v616, 7
        %v618 = vsub.s32 0, %v617
        %v619 = vrot.slane %v615, %v618
        %v620 = vadd.f32 %v608, %v619
        %v621 = vmax.f32 %v620, 0.0
        %s622 = scalar_lea.vmem %s231, 32 [#allocation7]
        %623 = vst [vmem:[%s622] sm:$0xff] %v621
        %v624 = vstv %s246
        %v625 = vmul.f32 %v394, %v624
        %v626 = vstv %s254
        %v627 = vmul.f32 %v387, %v626
        %v628 = vadd.f32 %v625, %v627
        %v629 = vstv %s262
        %v630 = vmul.f32 %v401, %v629
        %v631 = vadd.f32 %v628, %v630
        %v632 = vstv %s270
        %v633 = vmul.f32 %v407, %v632
        %v634 = vadd.f32 %v631, %v633
        %v635 = vstv %s278
        %v636 = vmul.f32 %v404, %v635
        %v637 = vadd.f32 %v634, %v636
        %v638 = vstv %s286
        %v639 = vmul.f32 %v410, %v638
        %v640 = vadd.f32 %v637, %v639
        %v641 = vstv %s294
        %v642 = vmul.f32 %v416, %v641
        %v643 = vadd.f32 %v640, %v642
        %v644 = vstv %s302
        %v645 = vmul.f32 %v413, %v644
        %v646 = vadd.f32 %v643, %v645
        %v647 = vstv %s310
        %v648 = vmul.f32 %v419, %v647
        %v649 = vadd.f32 %v646, %v648
        %v650 = vstv %s342
        %v651 = vmul.f32 %v237, %v650
        %v652 = vstv %s318
        %v653 = vsub.f32 %v652, %v651
        %v654 = vstv %s350
        %v655 = vmul.f32 %v238, %v654
        %v656 = vsub.f32 %v653, %v655
        %v657 = vlaneseq
        %v658 = vshrl.u32 %v657, 7
        %v659 = vsub.s32 0, %v658
        %v660 = vrot.slane %v656, %v659
        %v661 = vadd.f32 %v649, %v660
        %v662 = vmax.f32 %v661, 0.0
        %s663 = scalar_lea.vmem %s231, 40 [#allocation7]
        %664 = vst [vmem:[%s663] sm:$0xff] %v662
        %v665 = vstv %s247
        %v666 = vmul.f32 %v394, %v665
        %v667 = vstv %s255
        %v668 = vmul.f32 %v387, %v667
        %v669 = vadd.f32 %v666, %v668
        %v670 = vstv %s263
        %v671 = vmul.f32 %v401, %v670
        %v672 = vadd.f32 %v669, %v671
        %v673 = vstv %s271
        %v674 = vmul.f32 %v407, %v673
        %v675 = vadd.f32 %v672, %v674
        %v676 = vstv %s279
        %v677 = vmul.f32 %v404, %v676
        %v678 = vadd.f32 %v675, %v677
        %v679 = vstv %s287
        %v680 = vmul.f32 %v410, %v679
        %v681 = vadd.f32 %v678, %v680
        %v682 = vstv %s295
        %v683 = vmul.f32 %v416, %v682
        %v684 = vadd.f32 %v681, %v683
        %v685 = vstv %s303
        %v686 = vmul.f32 %v413, %v685
        %v687 = vadd.f32 %v684, %v686
        %v688 = vstv %s311
        %v689 = vmul.f32 %v419, %v688
        %v690 = vadd.f32 %v687, %v689
        %v691 = vstv %s343
        %v692 = vmul.f32 %v237, %v691
        %v693 = vstv %s319
        %v694 = vsub.f32 %v693, %v692
        %v695 = vstv %s351
        %v696 = vmul.f32 %v238, %v695
        %v697 = vsub.f32 %v694, %v696
        %v698 = vlaneseq
        %v699 = vshrl.u32 %v698, 7
        %v700 = vsub.s32 0, %v699
        %v701 = vrot.slane %v697, %v700
        %v702 = vadd.f32 %v690, %v701
        %v703 = vmax.f32 %v702, 0.0
        %s704 = scalar_lea.vmem %s231, 48 [#allocation7]
        %705 = vst [vmem:[%s704] sm:$0xff] %v703
        %v706 = vstv %s248
        %v707 = vmul.f32 %v394, %v706
        %v708 = vstv %s256
        %v709 = vmul.f32 %v387, %v708
        %v710 = vadd.f32 %v707, %v709
        %v711 = vstv %s264
        %v712 = vmul.f32 %v401, %v711
        %v713 = vadd.f32 %v710, %v712
        %v714 = vstv %s272
        %v715 = vmul.f32 %v407, %v714
        %v716 = vadd.f32 %v713, %v715
        %v717 = vstv %s280
        %v718 = vmul.f32 %v404, %v717
        %v719 = vadd.f32 %v716, %v718
        %v720 = vstv %s288
        %v721 = vmul.f32 %v410, %v720
        %v722 = vadd.f32 %v719, %v721
        %v723 = vstv %s296
        %v724 = vmul.f32 %v416, %v723
        %v725 = vadd.f32 %v722, %v724
        %v726 = vstv %s304
        %v727 = vmul.f32 %v413, %v726
        %v728 = vadd.f32 %v725, %v727
        %v729 = vstv %s312
        %v730 = vmul.f32 %v419, %v729
        %v731 = vadd.f32 %v728, %v730
        %v732 = vstv %s344
        %v733 = vmul.f32 %v237, %v732
        %v734 = vstv %s320
        %v735 = vsub.f32 %v734, %v733
        %v736 = vstv %s352
        %v737 = vmul.f32 %v238, %v736
        %v738 = vsub.f32 %v735, %v737
        %v739 = vlaneseq
        %v740 = vshrl.u32 %v739, 7
        %v741 = vsub.s32 0, %v740
        %v742 = vrot.slane %v738, %v741
        %v743 = vadd.f32 %v731, %v742
        %v744 = vmax.f32 %v743, 0.0
        %s745 = scalar_lea.vmem %s231, 56 [#allocation7]
        %746 = vst [vmem:[%s745] sm:$0xff] %v744
        %p747 = scmp.eq.s32.totalorder %s25, 0
        // Predicated region
        $region45: #{tpu_custom_call.1} parent=35 // pred_check
          %p748 = pneg %p747
        $region46: #{tpu_custom_call.1} parent=35 // pred_check_branch
          %750 = sbr.rel (%p748) target = $region48
        $region47: #{tpu_custom_call.1} parent=35 // pred_region
          %s751 = ssub.f32 0.0, %s321
          %v752 = vstv %s353
          %v753 = vmul.f32 %v237, %v752
          %v754 = vstv %s751
          %v755 = vadd.f32 %v754, %v753
          %v756 = vstv %s361
          %v757 = vmul.f32 %v238, %v756
          %v758 = vadd.f32 %v755, %v757
          %v759 = vadd.f32 %v445, %v452
          %v760 = vadd.f32 %v759, %v758
          %v761 = vmax.f32 %v760, 0.0
          %762 = vst [vmem:[%s231] sm:$0x1] %v761
          %s763 = ssub.f32 0.0, %s322
          %v764 = vstv %s354
          %v765 = vmul.f32 %v237, %v764
          %v766 = vstv %s763
          %v767 = vadd.f32 %v766, %v765
          %v768 = vstv %s362
          %v769 = vmul.f32 %v238, %v768
          %v770 = vadd.f32 %v767, %v769
          %v771 = vadd.f32 %v485, %v492
          %v772 = vadd.f32 %v771, %v770
          %v773 = vmax.f32 %v772, 0.0
          %774 = vst [vmem:[%s499] sm:$0x1] %v773
          %s775 = ssub.f32 0.0, %s323
          %v776 = vstv %s355
          %v777 = vmul.f32 %v237, %v776
          %v778 = vstv %s775
          %v779 = vadd.f32 %v778, %v777
          %v780 = vstv %s363
          %v781 = vmul.f32 %v238, %v780
          %v782 = vadd.f32 %v779, %v781
          %v783 = vadd.f32 %v526, %v533
          %v784 = vadd.f32 %v783, %v782
          %v785 = vmax.f32 %v784, 0.0
          %786 = vst [vmem:[%s540] sm:$0x1] %v785
          %s787 = ssub.f32 0.0, %s324
          %v788 = vstv %s356
          %v789 = vmul.f32 %v237, %v788
          %v790 = vstv %s787
          %v791 = vadd.f32 %v790, %v789
          %v792 = vstv %s364
          %v793 = vmul.f32 %v238, %v792
          %v794 = vadd.f32 %v791, %v793
          %v795 = vadd.f32 %v567, %v574
          %v796 = vadd.f32 %v795, %v794
          %v797 = vmax.f32 %v796, 0.0
          %798 = vst [vmem:[%s581] sm:$0x1] %v797
          %s799 = ssub.f32 0.0, %s325
          %v800 = vstv %s357
          %v801 = vmul.f32 %v237, %v800
          %v802 = vstv %s799
          %v803 = vadd.f32 %v802, %v801
          %v804 = vstv %s365
          %v805 = vmul.f32 %v238, %v804
          %v806 = vadd.f32 %v803, %v805
          %v807 = vadd.f32 %v608, %v615
          %v808 = vadd.f32 %v807, %v806
          %v809 = vmax.f32 %v808, 0.0
          %810 = vst [vmem:[%s622] sm:$0x1] %v809
          %s811 = ssub.f32 0.0, %s326
          %v812 = vstv %s358
          %v813 = vmul.f32 %v237, %v812
          %v814 = vstv %s811
          %v815 = vadd.f32 %v814, %v813
          %v816 = vstv %s366
          %v817 = vmul.f32 %v238, %v816
          %v818 = vadd.f32 %v815, %v817
          %v819 = vadd.f32 %v649, %v656
          %v820 = vadd.f32 %v819, %v818
          %v821 = vmax.f32 %v820, 0.0
          %822 = vst [vmem:[%s663] sm:$0x1] %v821
          %s823 = ssub.f32 0.0, %s327
          %v824 = vstv %s359
          %v825 = vmul.f32 %v237, %v824
          %v826 = vstv %s823
          %v827 = vadd.f32 %v826, %v825
          %v828 = vstv %s367
          %v829 = vmul.f32 %v238, %v828
          %v830 = vadd.f32 %v827, %v829
          %v831 = vadd.f32 %v690, %v697
          %v832 = vadd.f32 %v831, %v830
          %v833 = vmax.f32 %v832, 0.0
          %834 = vst [vmem:[%s704] sm:$0x1] %v833
          %s835 = ssub.f32 0.0, %s328
          %v836 = vstv %s360
          %v837 = vmul.f32 %v237, %v836
          %v838 = vstv %s835
          %v839 = vadd.f32 %v838, %v837
          %v840 = vstv %s368
          %v841 = vmul.f32 %v238, %v840
          %v842 = vadd.f32 %v839, %v841
          %v843 = vadd.f32 %v731, %v738
          %v844 = vadd.f32 %v843, %v842
          %v845 = vmax.f32 %v844, 0.0
          %846 = vst [vmem:[%s745] sm:$0x1] %v845
        $region48: #{tpu_custom_call.1} parent=35 // pred_fallthru
          _
        %p847 = scmp.eq.s32.totalorder %s25, 1
        // Predicated region
        $region49: #{tpu_custom_call.1} parent=35 // pred_check
          %p848 = pneg %p847
        $region50: #{tpu_custom_call.1} parent=35 // pred_check_branch
          %850 = sbr.rel (%p848) target = $region52
        $region51: #{tpu_custom_call.1} parent=35 // pred_region
          %s851 = ssub.f32 0.0, %s329
          %v852 = vstv %s369
          %v853 = vmul.f32 %v237, %v852
          %v854 = vstv %s851
          %v855 = vadd.f32 %v854, %v853
          %v856 = vstv %s377
          %v857 = vmul.f32 %v238, %v856
          %v858 = vadd.f32 %v855, %v857
          %v860 = vrot.slane %v452, 1
          %v862 = vadd.f32 %v445, %v860
          %v864 = vrot.slane %v858, 1
          %v866 = vadd.f32 %v862, %v864
          %v867 = vmax.f32 %v866, 0.0
          %868 = vst [vmem:[%s231] sm:$0x80] %v867
          %s869 = ssub.f32 0.0, %s330
          %v870 = vstv %s370
          %v871 = vmul.f32 %v237, %v870
          %v872 = vstv %s869
          %v873 = vadd.f32 %v872, %v871
          %v874 = vstv %s378
          %v875 = vmul.f32 %v238, %v874
          %v876 = vadd.f32 %v873, %v875
          %v878 = vrot.slane %v492, 1
          %v880 = vadd.f32 %v485, %v878
          %v882 = vrot.slane %v876, 1
          %v884 = vadd.f32 %v880, %v882
          %v885 = vmax.f32 %v884, 0.0
          %886 = vst [vmem:[%s499] sm:$0x80] %v885
          %s887 = ssub.f32 0.0, %s331
          %v888 = vstv %s371
          %v889 = vmul.f32 %v237, %v888
          %v890 = vstv %s887
          %v891 = vadd.f32 %v890, %v889
          %v892 = vstv %s379
          %v893 = vmul.f32 %v238, %v892
          %v894 = vadd.f32 %v891, %v893
          %v896 = vrot.slane %v533, 1
          %v898 = vadd.f32 %v526, %v896
          %v900 = vrot.slane %v894, 1
          %v902 = vadd.f32 %v898, %v900
          %v903 = vmax.f32 %v902, 0.0
          %904 = vst [vmem:[%s540] sm:$0x80] %v903
          %s905 = ssub.f32 0.0, %s332
          %v906 = vstv %s372
          %v907 = vmul.f32 %v237, %v906
          %v908 = vstv %s905
          %v909 = vadd.f32 %v908, %v907
          %v910 = vstv %s380
          %v911 = vmul.f32 %v238, %v910
          %v912 = vadd.f32 %v909, %v911
          %v914 = vrot.slane %v574, 1
          %v916 = vadd.f32 %v567, %v914
          %v918 = vrot.slane %v912, 1
          %v920 = vadd.f32 %v916, %v918
          %v921 = vmax.f32 %v920, 0.0
          %922 = vst [vmem:[%s581] sm:$0x80] %v921
          %s923 = ssub.f32 0.0, %s333
          %v924 = vstv %s373
          %v925 = vmul.f32 %v237, %v924
          %v926 = vstv %s923
          %v927 = vadd.f32 %v926, %v925
          %v928 = vstv %s381
          %v929 = vmul.f32 %v238, %v928
          %v930 = vadd.f32 %v927, %v929
          %v932 = vrot.slane %v615, 1
          %v934 = vadd.f32 %v608, %v932
          %v936 = vrot.slane %v930, 1
          %v938 = vadd.f32 %v934, %v936
          %v939 = vmax.f32 %v938, 0.0
          %940 = vst [vmem:[%s622] sm:$0x80] %v939
          %s941 = ssub.f32 0.0, %s334
          %v942 = vstv %s374
          %v943 = vmul.f32 %v237, %v942
          %v944 = vstv %s941
          %v945 = vadd.f32 %v944, %v943
          %v946 = vstv %s382
          %v947 = vmul.f32 %v238, %v946
          %v948 = vadd.f32 %v945, %v947
          %v950 = vrot.slane %v656, 1
          %v952 = vadd.f32 %v649, %v950
          %v954 = vrot.slane %v948, 1
          %v956 = vadd.f32 %v952, %v954
          %v957 = vmax.f32 %v956, 0.0
          %958 = vst [vmem:[%s663] sm:$0x80] %v957
          %s959 = ssub.f32 0.0, %s335
          %v960 = vstv %s375
          %v961 = vmul.f32 %v237, %v960
          %v962 = vstv %s959
          %v963 = vadd.f32 %v962, %v961
          %v964 = vstv %s383
          %v965 = vmul.f32 %v238, %v964
          %v966 = vadd.f32 %v963, %v965
          %v968 = vrot.slane %v697, 1
          %v970 = vadd.f32 %v690, %v968
          %v972 = vrot.slane %v966, 1
          %v974 = vadd.f32 %v970, %v972
          %v975 = vmax.f32 %v974, 0.0
          %976 = vst [vmem:[%s704] sm:$0x80] %v975
          %s977 = ssub.f32 0.0, %s336
          %v978 = vstv %s376
          %v979 = vmul.f32 %v237, %v978
          %v980 = vstv %s977
          %v981 = vadd.f32 %v980, %v979
          %v982 = vstv %s384
          %v983 = vmul.f32 %v238, %v982
          %v984 = vadd.f32 %v981, %v983
          %v986 = vrot.slane %v738, 1
          %v988 = vadd.f32 %v731, %v986
          %v990 = vrot.slane %v984, 1
          %v992 = vadd.f32 %v988, %v990
          %v993 = vmax.f32 %v992, 0.0
          %994 = vst [vmem:[%s745] sm:$0x80] %v993
        $region52: #{tpu_custom_call.1} parent=35 // pred_fallthru
          _
        %s995 = sand.u32 %s131, 1
        %s996 = scalar_lea.sflag [#allocation3], %s995
        %s997 = sand.u32 %s131, 1
        %s998 = smul.addr %s997, 64
        %s999 = scalar_lea.vmem [#allocation7], %s998
        // Predicated region
        $region53: #{tpu_custom_call.1} parent=35 // pred_check
          %p1000 = pneg %p141
        $region54: #{tpu_custom_call.1} parent=35 // pred_check_branch
          %1002 = sbr.rel (%p1000) target = $region56
        $region55: #{tpu_custom_call.1} parent=35 // pred_region
          %s1004 = ssub.s32 1024, 1024
          %1005 = vsyncadd %s996, %s1004
          %s1006 = smul.addr %s24, 16
          %s1007 = sadd.s32 %s25, %s1006
          %s1008 = smul.addr %s1007, 128
          %s1009 = scalar_lea.hbm %s4, %s1008
          %s1010 = sshll.u32 %s999, 4
          %s1011 = int_to_ptr.vmem [resolvable:$true] %s1010
          %1016 = dma.vmem_to_hbm [thread:$0]  %s1011, 1024, %s1009, %s996, 128, 256, 8
        $region56: #{tpu_custom_call.1} parent=35 // pred_fallthru
          _
      $region36: #{tpu_custom_call.1} parent=5 // pred_fallthru
        _
      %p1017 = scmp.le.s32.totalorder 2, %s15
      // Predicated region
      $region57: #{tpu_custom_call.1} parent=5 // pred_check
        %p1018 = pneg %p1017
      $region58: #{tpu_custom_call.1} parent=5 // pred_check_branch
        %1020 = sbr.rel (%p1018) target = $region60
      $region59: #{tpu_custom_call.1} parent=5 // pred_region
        %s1021 = ssub.s32 %s15, 2
        // Predicated region
        $region61: #{tpu_custom_call.1} parent=59 // pred_check
          %p1022 = pneg %p147
        $region62: #{tpu_custom_call.1} parent=59 // pred_check_branch
          %1024 = sbr.rel (%p1022) target = $region64
        $region63: #{tpu_custom_call.1} parent=59 // pred_region
          %s1025 = sand.u32 %s132, 1
          %s1026 = scalar_lea.sflag [#allocation3], %s1025
          %s1027 = sand.u32 %s132, 1
          %s1028 = smul.addr %s1027, 64
          %s1029 = scalar_lea.vmem [#allocation7], %s1028
          %1030 = dma.done %s1026, 1024
        $region64: #{tpu_custom_call.1} parent=59 // pred_fallthru
          _
      $region60: #{tpu_custom_call.1} parent=5 // pred_fallthru
        _
    $region6: #{tpu_custom_call.1} parent=1 // loop_footer
      %s19 = sadd.s32 1, %s15
    $region7: #{tpu_custom_call.1} parent=1 // loop_footer_branch
      %14 = sbr.rel target = $region3
    $region8: #{tpu_custom_call.1} parent=1 // loop_exit
      _
    %1031 = vsyncpa [#allocation3], 1
    %s1032 = scalar_lea.sflag [#allocation3], 1
    %1033 = vsyncpa %s1032, 1
    %1034 = vsyncpa [#allocation4], 1
    %s1035 = scalar_lea.sflag [#allocation4], 1
    %1036 = vsyncpa %s1035, 1
    %1037 = vsyncpa [#allocation6], 1

</llo_original>
